<compile_context>
chip_gen: v5e
topology: v5e:2x2
jax: 0.10.0
libtpu: 0.0.40
codegen_flags: <defaults>
</compile_context>

<pallas_src>
import functools

import jax
import jax.numpy as jnp
from jax.experimental import pallas as pl
from jax.experimental.pallas import tpu as pltpu


# ----------------------------------------------------------------------------
# Fused Pallas kernel: one grid step == one batch element (16 tokens here).
# ----------------------------------------------------------------------------
def _fused_forward_kernel(
    xp_ref,                                            # (S, Cin*p*p) raw patches
    pw_ref, pb_ref, pos_ref, ln1g_ref, ln1b_ref,
    qw_ref, qb_ref, kw_ref, kb_ref, vw_ref, vb_ref, pjw_ref, pjb_ref,
    ln2g_ref, ln2b_ref, m1w_ref, m1b_ref, m2w_ref, m2b_ref,
    nkw_ref, nkb_ref, nlg_ref, nlb_ref,
    u1w_ref, u1b_ref, u2w_ref, u2b_ref,
    o_ref,                                             # (S, 4*up2_cols)
    *, heads, head_dim, up2_cols, eps):
    f32 = jnp.float32

    def ln(x, g, b):
        mu = jnp.mean(x, axis=-1, keepdims=True)
        var = jnp.mean(jnp.square(x - mu), axis=-1, keepdims=True)
        return (x - mu) * jax.lax.rsqrt(var + eps) * g + b

    # --- patch-embed conv (ImageNet normalize folded into weights) + pos ---
    t = jnp.dot(xp_ref[...], pw_ref[...], preferred_element_type=f32)
    t = t + pb_ref[...] + pos_ref[...]

    # --- ViT block: multi-head attention ---
    h = ln(t, ln1g_ref[...], ln1b_ref[...])
    scale = 1.0 / float(head_dim) ** 0.5
    attn_proj = jnp.zeros_like(t)
    for hh in range(heads):                            # static unroll (heads=2)
        q = jnp.dot(h, qw_ref[hh], preferred_element_type=f32) + qb_ref[hh]
        k = jnp.dot(h, kw_ref[hh], preferred_element_type=f32) + kb_ref[hh]
        v = jnp.dot(h, vw_ref[hh], preferred_element_type=f32) + vb_ref[hh]
        s = jnp.dot(q, k.T, preferred_element_type=f32) * scale
        s = s - jnp.max(s, axis=-1, keepdims=True)
        p = jnp.exp(s)
        p = p * pl.reciprocal(jnp.sum(p, axis=-1, keepdims=True), approx=True)
        o_h = jnp.dot(p, v, preferred_element_type=f32)            # (S, head_dim)
        # per-head slice of the output projection -> no lane concat needed
        attn_proj = attn_proj + jnp.dot(o_h, pjw_ref[hh], preferred_element_type=f32)
    t = t + attn_proj + pjb_ref[...]

    # --- ViT block: MLP ---
    h = ln(t, ln2g_ref[...], ln2b_ref[...])
    # TODO(synk): PyTorch nn.GELU default is exact erf; tanh approximation is
    # used here for guaranteed Mosaic lowering (difference ~1e-3).
    h = jax.nn.gelu(jnp.dot(h, m1w_ref[...], preferred_element_type=f32) + m1b_ref[...],
                    approximate=True)
    t = t + jnp.dot(h, m2w_ref[...], preferred_element_type=f32) + m2b_ref[...]

    # --- neck: 1x1 conv (matmul) + LayerNorm2d ---
    e = jnp.dot(t, nkw_ref[...], preferred_element_type=f32) + nkb_ref[...]
    e = ln(e, nlg_ref[...], nlb_ref[...])

    # --- mask-decoder upscale path: ConvT(2,2)+GELU then ConvT(2,2) ---
    # u1w_ref is (4, out_chans, dec_mid): one matrix per up1 sub-pixel tap, so
    # the second ConvTranspose can be applied without any spatial reshuffle.
    for kk in range(4):                                # static unroll
        y1 = jax.nn.gelu(
            jnp.dot(e, u1w_ref[kk], preferred_element_type=f32) + u1b_ref[...],
            approximate=True)                          # (S, dec_mid)
        y2 = jnp.dot(y1, u2w_ref[...], preferred_element_type=f32) + u2b_ref[...]
        o_ref[:, kk * up2_cols:(kk + 1) * up2_cols] = y2.astype(o_ref.dtype)


# ----------------------------------------------------------------------------
# Parameter init (same synthetic weights as before) + one-time kernel layout prep
# ----------------------------------------------------------------------------
def init_params(key, *, cin=3, patch=8, hidden=64, mlp=128, out_chans=32,
                dec_mid=16, num_classes=29, hp=4, wp=4):
    ks = jax.random.split(key, 10)

    def nrm(k, shape, scale=0.02):
        return (scale * jax.random.normal(k, shape)).astype(jnp.float32)

    p = {}
    p["patch_w"] = nrm(ks[0], (hidden, cin, patch, patch))
    p["patch_b"] = jnp.zeros((hidden,), jnp.float32)
    p["pos"] = nrm(ks[1], (1, hp, wp, hidden))
    p["ln1_g"] = jnp.ones((hidden,), jnp.float32)
    p["ln1_b"] = jnp.zeros((hidden,), jnp.float32)
    p["qkv_w"] = nrm(ks[2], (hidden, 3 * hidden))
    p["qkv_b"] = jnp.zeros((3 * hidden,), jnp.float32)
    p["proj_w"] = nrm(ks[3], (hidden, hidden))
    p["proj_b"] = jnp.zeros((hidden,), jnp.float32)
    p["ln2_g"] = jnp.ones((hidden,), jnp.float32)
    p["ln2_b"] = jnp.zeros((hidden,), jnp.float32)
    p["mlp1_w"] = nrm(ks[4], (hidden, mlp))
    p["mlp1_b"] = jnp.zeros((mlp,), jnp.float32)
    p["mlp2_w"] = nrm(ks[5], (mlp, hidden))
    p["mlp2_b"] = jnp.zeros((hidden,), jnp.float32)
    p["neck_w"] = nrm(ks[6], (out_chans, hidden, 1, 1))
    p["neck_b"] = jnp.zeros((out_chans,), jnp.float32)
    p["neck_ln_g"] = jnp.ones((out_chans,), jnp.float32)
    p["neck_ln_b"] = jnp.zeros((out_chans,), jnp.float32)
    # mask decoder upscale path (upscale_conv2 replaced -> num_classes outputs)
    p["up1_w"] = nrm(ks[7], (out_chans, dec_mid, 2, 2))
    p["up1_b"] = jnp.zeros((dec_mid,), jnp.float32)
    p["up2_w"] = nrm(ks[8], (dec_mid, num_classes, 2, 2))
    p["up2_b"] = jnp.zeros((num_classes,), jnp.float32)
    return p


def prepare_params(params, *, patch=8, heads=2, num_classes=29):
    """One-time (outside jit) re-layout of PyTorch-style weights into matmul form."""
    hidden = params["patch_w"].shape[0]
    head_dim = hidden // heads

    # Fold processor ImageNet normalization into the patch-embed conv (exact).
    mean = jnp.array([0.485, 0.456, 0.406], jnp.float32)
    std = jnp.array([0.229, 0.224, 0.225], jnp.float32)
    mean_full = jnp.repeat(mean, patch * patch)                     # (cin*p*p,)
    std_full = jnp.repeat(std, patch * patch)
    w_mat = params["patch_w"].reshape(hidden, -1).T                 # (cin*p*p, hidden)
    patch_w = w_mat / std_full[:, None]
    patch_b = params["patch_b"] - (mean_full / std_full) @ w_mat

    def split_qkv(which):
        w = params["qkv_w"][:, which * hidden:(which + 1) * hidden]
        b = params["qkv_b"][which * hidden:(which + 1) * hidden]
        w = jnp.transpose(w.reshape(hidden, heads, head_dim), (1, 0, 2))
        return w, b.reshape(heads, 1, head_dim)

    q_w, q_b = split_qkv(0)
    k_w, k_b = split_qkv(1)
    v_w, v_b = split_qkv(2)
    proj_w = params["proj_w"].reshape(heads, head_dim, hidden)      # per-head rows

    neck_w = params["neck_w"].reshape(params["neck_w"].shape[0], -1).T  # (hidden, out_chans)

    # up1: ConvTranspose2d(out_chans -> dec_mid, k=2, s=2) as 4 per-tap matrices.
    out_chans, dec_mid = params["up1_w"].shape[0], params["up1_w"].shape[1]
    u1w = jnp.transpose(params["up1_w"], (0, 2, 3, 1)).reshape(out_chans, 4, dec_mid)
    u1w = jnp.transpose(u1w, (1, 0, 2))                             # (4, out_chans, dec_mid)
    u1b = params["up1_b"].reshape(1, dec_mid)

    # up2: ConvTranspose2d(dec_mid -> num_classes, k=2, s=2); pad classes to a
    # multiple of 32 so the kernel output last dim is a multiple of 128 lanes.
    class_pad = -(-num_classes // 32) * 32
    u2w_full = jnp.pad(params["up2_w"],
                       ((0, 0), (0, class_pad - num_classes), (0, 0), (0, 0)))
    u2b_full = jnp.pad(params["up2_b"], ((0, class_pad - num_classes),))
    u2w = jnp.transpose(u2w_full, (0, 2, 3, 1)).reshape(dec_mid, 4 * class_pad)
    u2b = jnp.tile(u2b_full, 4).reshape(1, 4 * class_pad)

    row = lambda v: v.reshape(1, -1)
    return dict(
        patch_w=patch_w, patch_b=row(patch_b),
        pos=params["pos"].reshape(-1, hidden),
        ln1_g=row(params["ln1_g"]), ln1_b=row(params["ln1_b"]),
        q_w=q_w, q_b=q_b, k_w=k_w, k_b=k_b, v_w=v_w, v_b=v_b,
        proj_w=proj_w, proj_b=row(params["proj_b"]),
        ln2_g=row(params["ln2_g"]), ln2_b=row(params["ln2_b"]),
        mlp1_w=params["mlp1_w"], mlp1_b=row(params["mlp1_b"]),
        mlp2_w=params["mlp2_w"], mlp2_b=row(params["mlp2_b"]),
        neck_w=neck_w, neck_b=row(params["neck_b"]),
        neck_ln_g=row(params["neck_ln_g"]), neck_ln_b=row(params["neck_ln_b"]),
        up1_w=u1w, up1_b=u1b, up2_w=u2w, up2_b=u2b,
    )


# ----------------------------------------------------------------------------
# Forward wrapper: one pallas_call + layout plumbing only.
# ----------------------------------------------------------------------------
def sam_vit_forward(images_nchw, masks, prepped, *, patch=8, num_classes=29):
    del masks  # TODO(synk): HF SamModel does not compute a loss from labels; ignored.
    B, C, H, W = images_nchw.shape
    Hp, Wp = H // patch, W // patch
    S = Hp * Wp
    heads, _, head_dim = prepped["q_w"].shape
    up2_cols = prepped["up2_w"].shape[1]                # 2*2*class_pad (=128)
    class_pad = up2_cols // 4
    out_cols = 4 * up2_cols                             # lane-dense (multiple of 128)

    # Patchify raw pixels; normalization is already folded into patch_w/patch_b.
    xp = images_nchw.reshape(B, C, Hp, patch, Wp, patch)
    xp = jnp.transpose(xp, (0, 2, 4, 1, 3, 5)).reshape(B * S, C * patch * patch)

    order = ["patch_w", "patch_b", "pos", "ln1_g", "ln1_b",
             "q_w", "q_b", "k_w", "k_b", "v_w", "v_b", "proj_w", "proj_b",
             "ln2_g", "ln2_b", "mlp1_w", "mlp1_b", "mlp2_w", "mlp2_b",
             "neck_w", "neck_b", "neck_ln_g", "neck_ln_b",
             "up1_w", "up1_b", "up2_w", "up2_b"]
    weights = [prepped[k] for k in order]

    in_specs = [pl.BlockSpec((S, C * patch * patch), lambda b: (b, 0))]
    in_specs += [pl.BlockSpec(w.shape, (lambda b, n=w.ndim: (0,) * n)) for w in weights]

    out = pl.pallas_call(
        functools.partial(_fused_forward_kernel, heads=heads, head_dim=head_dim,
                          up2_cols=up2_cols, eps=1e-6),
        out_shape=jax.ShapeDtypeStruct((B * S, out_cols), jnp.float32),
        grid=(B,),
        in_specs=in_specs,
        out_specs=pl.BlockSpec((S, out_cols), lambda b: (b, 0)),
        compiler_params=pltpu.CompilerParams(dimension_semantics=("parallel",)),
    )(xp, *weights)

    # Columns are (kh1, kw1, kh2, kw2, class); scatter sub-pixel taps back to the
    # 4x-upscaled spatial grid and drop the padded classes.
    m = out.reshape(B, Hp, Wp, 2, 2, 2, 2, class_pad)
    m = jnp.transpose(m, (0, 7, 1, 3, 5, 2, 4, 6))      # (b, c, i, kh1, kh2, j, kw1, kw2)
    m = m.reshape(B, class_pad, 4 * Hp, 4 * Wp)
    return m[:, :num_classes]                           # NCHW predicted masks


# ----------------------------------------------------------------------------
if __name__ == "__main__":
    key = jax.random.PRNGKey(0)
    pkey, ikey, mkey = jax.random.split(key, 3)

    NUM_CLASSES = 29
    PATCH = 8
    HEADS = 2
    B, C, H, W = 2, 3, 32, 32

    params = init_params(pkey, num_classes=NUM_CLASSES, hp=H // PATCH, wp=W // PATCH)
    prepped = prepare_params(params, patch=PATCH, heads=HEADS, num_classes=NUM_CLASSES)

    images = jax.random.uniform(ikey, (B, C, H, W), jnp.float32)
    masks = jax.random.uniform(mkey, (B, 16, 16), jnp.float32)  # labels (unused, see TODO)

    fwd = jax.jit(functools.partial(sam_vit_forward, patch=PATCH, num_classes=NUM_CLASSES))
    out = fwd(images, masks, prepped)
    jax.block_until_ready(out)

    assert out.shape == (B, NUM_CLASSES, 16, 16), out.shape
    assert out.dtype == jnp.float32
    print("KERNEL_OK")
</pallas_src>

<mosaic_0001>
module attributes {stable_mosaic.version = 11 : i64} {
  func.func @_fused_forward_kernel(%arg0: i32, %arg1: memref<16x192xf32, #tpu.memory_space<vmem>>, %arg2: memref<192x64xf32, #tpu.memory_space<vmem>>, %arg3: memref<1x64xf32, #tpu.memory_space<vmem>>, %arg4: memref<16x64xf32, #tpu.memory_space<vmem>>, %arg5: memref<1x64xf32, #tpu.memory_space<vmem>>, %arg6: memref<1x64xf32, #tpu.memory_space<vmem>>, %arg7: memref<2x64x32xf32, #tpu.memory_space<vmem>>, %arg8: memref<2x1x32xf32, #tpu.memory_space<vmem>>, %arg9: memref<2x64x32xf32, #tpu.memory_space<vmem>>, %arg10: memref<2x1x32xf32, #tpu.memory_space<vmem>>, %arg11: memref<2x64x32xf32, #tpu.memory_space<vmem>>, %arg12: memref<2x1x32xf32, #tpu.memory_space<vmem>>, %arg13: memref<2x32x64xf32, #tpu.memory_space<vmem>>, %arg14: memref<1x64xf32, #tpu.memory_space<vmem>>, %arg15: memref<1x64xf32, #tpu.memory_space<vmem>>, %arg16: memref<1x64xf32, #tpu.memory_space<vmem>>, %arg17: memref<64x128xf32, #tpu.memory_space<vmem>>, %arg18: memref<1x128xf32, #tpu.memory_space<vmem>>, %arg19: memref<128x64xf32, #tpu.memory_space<vmem>>, %arg20: memref<1x64xf32, #tpu.memory_space<vmem>>, %arg21: memref<64x32xf32, #tpu.memory_space<vmem>>, %arg22: memref<1x32xf32, #tpu.memory_space<vmem>>, %arg23: memref<1x32xf32, #tpu.memory_space<vmem>>, %arg24: memref<1x32xf32, #tpu.memory_space<vmem>>, %arg25: memref<4x32x16xf32, #tpu.memory_space<vmem>>, %arg26: memref<1x16xf32, #tpu.memory_space<vmem>>, %arg27: memref<16x128xf32, #tpu.memory_space<vmem>>, %arg28: memref<1x128xf32, #tpu.memory_space<vmem>>, %arg29: memref<16x512xf32, #tpu.memory_space<vmem>>) attributes {dimension_semantics = [#tpu.dimension_semantics<parallel>], iteration_bounds = array<i64: 2>, scalar_prefetch = 0 : i64, scratch_operands = 0 : i64, tpu.core_type = #tpu.core_type<tc>, window_params = [{transform_indices = @transform_0, window_bounds = array<i64: 16, 192>}, {pipeline_mode = #tpu.pipeline_mode<synchronous>, transform_indices = @transform_1, window_bounds = array<i64: 192, 64>}, {pipeline_mode = #tpu.pipeline_mode<synchronous>, transform_indices = @transform_2, window_bounds = array<i64: 1, 64>}, {pipeline_mode = #tpu.pipeline_mode<synchronous>, transform_indices = @transform_3, window_bounds = array<i64: 16, 64>}, {pipeline_mode = #tpu.pipeline_mode<synchronous>, transform_indices = @transform_4, window_bounds = array<i64: 1, 64>}, {pipeline_mode = #tpu.pipeline_mode<synchronous>, transform_indices = @transform_5, window_bounds = array<i64: 1, 64>}, {pipeline_mode = #tpu.pipeline_mode<synchronous>, transform_indices = @transform_6, window_bounds = array<i64: 2, 64, 32>}, {pipeline_mode = #tpu.pipeline_mode<synchronous>, transform_indices = @transform_7, window_bounds = array<i64: 2, 1, 32>}, {pipeline_mode = #tpu.pipeline_mode<synchronous>, transform_indices = @transform_8, window_bounds = array<i64: 2, 64, 32>}, {pipeline_mode = #tpu.pipeline_mode<synchronous>, transform_indices = @transform_9, window_bounds = array<i64: 2, 1, 32>}, {pipeline_mode = #tpu.pipeline_mode<synchronous>, transform_indices = @transform_10, window_bounds = array<i64: 2, 64, 32>}, {pipeline_mode = #tpu.pipeline_mode<synchronous>, transform_indices = @transform_11, window_bounds = array<i64: 2, 1, 32>}, {pipeline_mode = #tpu.pipeline_mode<synchronous>, transform_indices = @transform_12, window_bounds = array<i64: 2, 32, 64>}, {pipeline_mode = #tpu.pipeline_mode<synchronous>, transform_indices = @transform_13, window_bounds = array<i64: 1, 64>}, {pipeline_mode = #tpu.pipeline_mode<synchronous>, transform_indices = @transform_14, window_bounds = array<i64: 1, 64>}, {pipeline_mode = #tpu.pipeline_mode<synchronous>, transform_indices = @transform_15, window_bounds = array<i64: 1, 64>}, {pipeline_mode = #tpu.pipeline_mode<synchronous>, transform_indices = @transform_16, window_bounds = array<i64: 64, 128>}, {pipeline_mode = #tpu.pipeline_mode<synchronous>, transform_indices = @transform_17, window_bounds = array<i64: 1, 128>}, {pipeline_mode = #tpu.pipeline_mode<synchronous>, transform_indices = @transform_18, window_bounds = array<i64: 128, 64>}, {pipeline_mode = #tpu.pipeline_mode<synchronous>, transform_indices = @transform_19, window_bounds = array<i64: 1, 64>}, {pipeline_mode = #tpu.pipeline_mode<synchronous>, transform_indices = @transform_20, window_bounds = array<i64: 64, 32>}, {pipeline_mode = #tpu.pipeline_mode<synchronous>, transform_indices = @transform_21, window_bounds = array<i64: 1, 32>}, {pipeline_mode = #tpu.pipeline_mode<synchronous>, transform_indices = @transform_22, window_bounds = array<i64: 1, 32>}, {pipeline_mode = #tpu.pipeline_mode<synchronous>, transform_indices = @transform_23, window_bounds = array<i64: 1, 32>}, {pipeline_mode = #tpu.pipeline_mode<synchronous>, transform_indices = @transform_24, window_bounds = array<i64: 4, 32, 16>}, {pipeline_mode = #tpu.pipeline_mode<synchronous>, transform_indices = @transform_25, window_bounds = array<i64: 1, 16>}, {pipeline_mode = #tpu.pipeline_mode<synchronous>, transform_indices = @transform_26, window_bounds = array<i64: 16, 128>}, {pipeline_mode = #tpu.pipeline_mode<synchronous>, transform_indices = @transform_27, window_bounds = array<i64: 1, 128>}, {transform_indices = @transform_28, window_bounds = array<i64: 16, 512>}]} {
    %c0 = arith.constant 0 : index
    %c0_0 = arith.constant 0 : index
    %0 = vector.load %arg1[%c0, %c0_0] : memref<16x192xf32, #tpu.memory_space<vmem>>, vector<16x192xf32>
    %c0_1 = arith.constant 0 : index
    %c0_2 = arith.constant 0 : index
    %1 = vector.load %arg2[%c0_1, %c0_2] : memref<192x64xf32, #tpu.memory_space<vmem>>, vector<192x64xf32>
    %cst = arith.constant dense<0.000000e+00> : vector<16x64xf32>
    %2 = tpu.matmul %0, %1, %cst {dimension_numbers = #tpu.dot_dimension_numbers<[1], [0], [0], [1], [0, 0, 1, 1], [], []>} : vector<16x192xf32>, vector<192x64xf32>, vector<16x64xf32> -> vector<16x64xf32>
    %c0_3 = arith.constant 0 : index
    %c0_4 = arith.constant 0 : index
    %3 = vector.load %arg3[%c0_3, %c0_4] : memref<1x64xf32, #tpu.memory_space<vmem>>, vector<1x64xf32>
    %4 = vector.broadcast %3 : vector<1x64xf32> to vector<16x64xf32>
    %5 = arith.addf %2, %4 : vector<16x64xf32>
    %c0_5 = arith.constant 0 : index
    %c0_6 = arith.constant 0 : index
    %6 = vector.load %arg4[%c0_5, %c0_6] : memref<16x64xf32, #tpu.memory_space<vmem>>, vector<16x64xf32>
    %7 = arith.addf %5, %6 : vector<16x64xf32>
    %c0_7 = arith.constant 0 : index
    %c0_8 = arith.constant 0 : index
    %8 = vector.load %arg5[%c0_7, %c0_8] : memref<1x64xf32, #tpu.memory_space<vmem>>, vector<1x64xf32>
    %c0_9 = arith.constant 0 : index
    %c0_10 = arith.constant 0 : index
    %9 = vector.load %arg6[%c0_9, %c0_10] : memref<1x64xf32, #tpu.memory_space<vmem>>, vector<1x64xf32>
    %cst_11 = arith.constant dense<0.000000e+00> : vector<16xf32>
    %10 = vector.multi_reduction <add>, %7, %cst_11 [1] : vector<16x64xf32> to vector<16xf32>
    %11 = vector.shape_cast %10 : vector<16xf32> to vector<16x1xf32>
    %cst_12 = arith.constant 6.400000e+01 : f32
    %12 = vector.broadcast %cst_12 : f32 to vector<16x1xf32>
    %13 = arith.divf %11, %12 : vector<16x1xf32>
    %14 = vector.broadcast %13 : vector<16x1xf32> to vector<16x64xf32>
    %15 = arith.subf %7, %14 : vector<16x64xf32>
    %16 = arith.mulf %15, %15 : vector<16x64xf32>
    %cst_13 = arith.constant dense<0.000000e+00> : vector<16xf32>
    %17 = vector.multi_reduction <add>, %16, %cst_13 [1] : vector<16x64xf32> to vector<16xf32>
    %18 = vector.shape_cast %17 : vector<16xf32> to vector<16x1xf32>
    %cst_14 = arith.constant 6.400000e+01 : f32
    %19 = vector.broadcast %cst_14 : f32 to vector<16x1xf32>
    %20 = arith.divf %18, %19 : vector<16x1xf32>
    %21 = vector.broadcast %13 : vector<16x1xf32> to vector<16x64xf32>
    %22 = arith.subf %7, %21 : vector<16x64xf32>
    %cst_15 = arith.constant 9.99999997E-7 : f32
    %23 = vector.broadcast %cst_15 : f32 to vector<16x1xf32>
    %24 = arith.addf %20, %23 : vector<16x1xf32>
    %25 = math.rsqrt %24 : vector<16x1xf32>
    %26 = vector.broadcast %25 : vector<16x1xf32> to vector<16x64xf32>
    %27 = arith.mulf %22, %26 : vector<16x64xf32>
    %28 = vector.broadcast %8 : vector<1x64xf32> to vector<16x64xf32>
    %29 = arith.mulf %27, %28 : vector<16x64xf32>
    %30 = vector.broadcast %9 : vector<1x64xf32> to vector<16x64xf32>
    %31 = arith.addf %29, %30 : vector<16x64xf32>
    %cst_16 = arith.constant 0.000000e+00 : f32
    %32 = vector.broadcast %cst_16 : f32 to vector<16x64xf32>
    %c0_17 = arith.constant 0 : index
    %c0_18 = arith.constant 0 : index
    %c0_19 = arith.constant 0 : index
    %33 = vector.load %arg7[%c0_17, %c0_18, %c0_19] : memref<2x64x32xf32, #tpu.memory_space<vmem>>, vector<1x64x32xf32>
    %34 = vector.shape_cast %33 : vector<1x64x32xf32> to vector<64x32xf32>
    %cst_20 = arith.constant dense<0.000000e+00> : vector<16x32xf32>
    %35 = tpu.matmul %31, %34, %cst_20 {dimension_numbers = #tpu.dot_dimension_numbers<[1], [0], [0], [1], [0, 0, 1, 1], [], []>} : vector<16x64xf32>, vector<64x32xf32>, vector<16x32xf32> -> vector<16x32xf32>
    %c0_21 = arith.constant 0 : index
    %c0_22 = arith.constant 0 : index
    %c0_23 = arith.constant 0 : index
    %36 = vector.load %arg8[%c0_21, %c0_22, %c0_23] : memref<2x1x32xf32, #tpu.memory_space<vmem>>, vector<1x1x32xf32>
    %37 = vector.shape_cast %36 : vector<1x1x32xf32> to vector<1x32xf32>
    %38 = vector.broadcast %37 : vector<1x32xf32> to vector<16x32xf32>
    %39 = arith.addf %35, %38 : vector<16x32xf32>
    %c0_24 = arith.constant 0 : index
    %c0_25 = arith.constant 0 : index
    %c0_26 = arith.constant 0 : index
    %40 = vector.load %arg9[%c0_24, %c0_25, %c0_26] : memref<2x64x32xf32, #tpu.memory_space<vmem>>, vector<1x64x32xf32>
    %41 = vector.shape_cast %40 : vector<1x64x32xf32> to vector<64x32xf32>
    %cst_27 = arith.constant dense<0.000000e+00> : vector<16x32xf32>
    %42 = tpu.matmul %31, %41, %cst_27 {dimension_numbers = #tpu.dot_dimension_numbers<[1], [0], [0], [1], [0, 0, 1, 1], [], []>} : vector<16x64xf32>, vector<64x32xf32>, vector<16x32xf32> -> vector<16x32xf32>
    %c0_28 = arith.constant 0 : index
    %c0_29 = arith.constant 0 : index
    %c0_30 = arith.constant 0 : index
    %43 = vector.load %arg10[%c0_28, %c0_29, %c0_30] : memref<2x1x32xf32, #tpu.memory_space<vmem>>, vector<1x1x32xf32>
    %44 = vector.shape_cast %43 : vector<1x1x32xf32> to vector<1x32xf32>
    %45 = vector.broadcast %44 : vector<1x32xf32> to vector<16x32xf32>
    %46 = arith.addf %42, %45 : vector<16x32xf32>
    %c0_31 = arith.constant 0 : index
    %c0_32 = arith.constant 0 : index
    %c0_33 = arith.constant 0 : index
    %47 = vector.load %arg11[%c0_31, %c0_32, %c0_33] : memref<2x64x32xf32, #tpu.memory_space<vmem>>, vector<1x64x32xf32>
    %48 = vector.shape_cast %47 : vector<1x64x32xf32> to vector<64x32xf32>
    %cst_34 = arith.constant dense<0.000000e+00> : vector<16x32xf32>
    %49 = tpu.matmul %31, %48, %cst_34 {dimension_numbers = #tpu.dot_dimension_numbers<[1], [0], [0], [1], [0, 0, 1, 1], [], []>} : vector<16x64xf32>, vector<64x32xf32>, vector<16x32xf32> -> vector<16x32xf32>
    %c0_35 = arith.constant 0 : index
    %c0_36 = arith.constant 0 : index
    %c0_37 = arith.constant 0 : index
    %50 = vector.load %arg12[%c0_35, %c0_36, %c0_37] : memref<2x1x32xf32, #tpu.memory_space<vmem>>, vector<1x1x32xf32>
    %51 = vector.shape_cast %50 : vector<1x1x32xf32> to vector<1x32xf32>
    %52 = vector.broadcast %51 : vector<1x32xf32> to vector<16x32xf32>
    %53 = arith.addf %49, %52 : vector<16x32xf32>
    %54 = tpu.transpose %46, [1, 0] : vector<16x32xf32> -> vector<32x16xf32>
    %cst_38 = arith.constant dense<0.000000e+00> : vector<16x16xf32>
    %55 = tpu.matmul %39, %54, %cst_38 {dimension_numbers = #tpu.dot_dimension_numbers<[1], [0], [0], [1], [0, 0, 1, 1], [], []>} : vector<16x32xf32>, vector<32x16xf32>, vector<16x16xf32> -> vector<16x16xf32>
    %cst_39 = arith.constant 0.176776692 : f32
    %56 = vector.broadcast %cst_39 : f32 to vector<16x16xf32>
    %57 = arith.mulf %55, %56 : vector<16x16xf32>
    %cst_40 = arith.constant dense<0xFF800000> : vector<16xf32>
    %58 = vector.multi_reduction <maximumf>, %57, %cst_40 [1] : vector<16x16xf32> to vector<16xf32>
    %59 = vector.shape_cast %58 : vector<16xf32> to vector<16x1xf32>
    %60 = vector.broadcast %59 : vector<16x1xf32> to vector<16x16xf32>
    %61 = arith.subf %57, %60 : vector<16x16xf32>
    %62 = math.exp %61 : vector<16x16xf32>
    %cst_41 = arith.constant dense<0.000000e+00> : vector<16xf32>
    %63 = vector.multi_reduction <add>, %62, %cst_41 [1] : vector<16x16xf32> to vector<16xf32>
    %64 = vector.shape_cast %63 : vector<16xf32> to vector<16x1xf32>
    %65 = tpu.reciprocal %64 {approx = true} : vector<16x1xf32> -> vector<16x1xf32>
    %66 = vector.broadcast %65 : vector<16x1xf32> to vector<16x16xf32>
    %67 = arith.mulf %62, %66 : vector<16x16xf32>
    %cst_42 = arith.constant dense<0.000000e+00> : vector<16x32xf32>
    %68 = tpu.matmul %67, %53, %cst_42 {dimension_numbers = #tpu.dot_dimension_numbers<[1], [0], [0], [1], [0, 0, 1, 1], [], []>} : vector<16x16xf32>, vector<16x32xf32>, vector<16x32xf32> -> vector<16x32xf32>
    %c0_43 = arith.constant 0 : index
    %c0_44 = arith.constant 0 : index
    %c0_45 = arith.constant 0 : index
    %69 = vector.load %arg13[%c0_43, %c0_44, %c0_45] : memref<2x32x64xf32, #tpu.memory_space<vmem>>, vector<1x32x64xf32>
    %70 = vector.shape_cast %69 : vector<1x32x64xf32> to vector<32x64xf32>
    %cst_46 = arith.constant dense<0.000000e+00> : vector<16x64xf32>
    %71 = tpu.matmul %68, %70, %cst_46 {dimension_numbers = #tpu.dot_dimension_numbers<[1], [0], [0], [1], [0, 0, 1, 1], [], []>} : vector<16x32xf32>, vector<32x64xf32>, vector<16x64xf32> -> vector<16x64xf32>
    %72 = arith.addf %32, %71 : vector<16x64xf32>
    %c1 = arith.constant 1 : index
    %c0_47 = arith.constant 0 : index
    %c0_48 = arith.constant 0 : index
    %73 = vector.load %arg7[%c1, %c0_47, %c0_48] : memref<2x64x32xf32, #tpu.memory_space<vmem>>, vector<1x64x32xf32>
    %74 = vector.shape_cast %73 : vector<1x64x32xf32> to vector<64x32xf32>
    %cst_49 = arith.constant dense<0.000000e+00> : vector<16x32xf32>
    %75 = tpu.matmul %31, %74, %cst_49 {dimension_numbers = #tpu.dot_dimension_numbers<[1], [0], [0], [1], [0, 0, 1, 1], [], []>} : vector<16x64xf32>, vector<64x32xf32>, vector<16x32xf32> -> vector<16x32xf32>
    %c1_50 = arith.constant 1 : index
    %c0_51 = arith.constant 0 : index
    %c0_52 = arith.constant 0 : index
    %76 = vector.load %arg8[%c1_50, %c0_51, %c0_52] : memref<2x1x32xf32, #tpu.memory_space<vmem>>, vector<1x1x32xf32>
    %77 = vector.shape_cast %76 : vector<1x1x32xf32> to vector<1x32xf32>
    %78 = vector.broadcast %77 : vector<1x32xf32> to vector<16x32xf32>
    %79 = arith.addf %75, %78 : vector<16x32xf32>
    %c1_53 = arith.constant 1 : index
    %c0_54 = arith.constant 0 : index
    %c0_55 = arith.constant 0 : index
    %80 = vector.load %arg9[%c1_53, %c0_54, %c0_55] : memref<2x64x32xf32, #tpu.memory_space<vmem>>, vector<1x64x32xf32>
    %81 = vector.shape_cast %80 : vector<1x64x32xf32> to vector<64x32xf32>
    %cst_56 = arith.constant dense<0.000000e+00> : vector<16x32xf32>
    %82 = tpu.matmul %31, %81, %cst_56 {dimension_numbers = #tpu.dot_dimension_numbers<[1], [0], [0], [1], [0, 0, 1, 1], [], []>} : vector<16x64xf32>, vector<64x32xf32>, vector<16x32xf32> -> vector<16x32xf32>
    %c1_57 = arith.constant 1 : index
    %c0_58 = arith.constant 0 : index
    %c0_59 = arith.constant 0 : index
    %83 = vector.load %arg10[%c1_57, %c0_58, %c0_59] : memref<2x1x32xf32, #tpu.memory_space<vmem>>, vector<1x1x32xf32>
    %84 = vector.shape_cast %83 : vector<1x1x32xf32> to vector<1x32xf32>
    %85 = vector.broadcast %84 : vector<1x32xf32> to vector<16x32xf32>
    %86 = arith.addf %82, %85 : vector<16x32xf32>
    %c1_60 = arith.constant 1 : index
    %c0_61 = arith.constant 0 : index
    %c0_62 = arith.constant 0 : index
    %87 = vector.load %arg11[%c1_60, %c0_61, %c0_62] : memref<2x64x32xf32, #tpu.memory_space<vmem>>, vector<1x64x32xf32>
    %88 = vector.shape_cast %87 : vector<1x64x32xf32> to vector<64x32xf32>
    %cst_63 = arith.constant dense<0.000000e+00> : vector<16x32xf32>
    %89 = tpu.matmul %31, %88, %cst_63 {dimension_numbers = #tpu.dot_dimension_numbers<[1], [0], [0], [1], [0, 0, 1, 1], [], []>} : vector<16x64xf32>, vector<64x32xf32>, vector<16x32xf32> -> vector<16x32xf32>
    %c1_64 = arith.constant 1 : index
    %c0_65 = arith.constant 0 : index
    %c0_66 = arith.constant 0 : index
    %90 = vector.load %arg12[%c1_64, %c0_65, %c0_66] : memref<2x1x32xf32, #tpu.memory_space<vmem>>, vector<1x1x32xf32>
    %91 = vector.shape_cast %90 : vector<1x1x32xf32> to vector<1x32xf32>
    %92 = vector.broadcast %91 : vector<1x32xf32> to vector<16x32xf32>
    %93 = arith.addf %89, %92 : vector<16x32xf32>
    %94 = tpu.transpose %86, [1, 0] : vector<16x32xf32> -> vector<32x16xf32>
    %cst_67 = arith.constant dense<0.000000e+00> : vector<16x16xf32>
    %95 = tpu.matmul %79, %94, %cst_67 {dimension_numbers = #tpu.dot_dimension_numbers<[1], [0], [0], [1], [0, 0, 1, 1], [], []>} : vector<16x32xf32>, vector<32x16xf32>, vector<16x16xf32> -> vector<16x16xf32>
    %cst_68 = arith.constant 0.176776692 : f32
    %96 = vector.broadcast %cst_68 : f32 to vector<16x16xf32>
    %97 = arith.mulf %95, %96 : vector<16x16xf32>
    %cst_69 = arith.constant dense<0xFF800000> : vector<16xf32>
    %98 = vector.multi_reduction <maximumf>, %97, %cst_69 [1] : vector<16x16xf32> to vector<16xf32>
    %99 = vector.shape_cast %98 : vector<16xf32> to vector<16x1xf32>
    %100 = vector.broadcast %99 : vector<16x1xf32> to vector<16x16xf32>
    %101 = arith.subf %97, %100 : vector<16x16xf32>
    %102 = math.exp %101 : vector<16x16xf32>
    %cst_70 = arith.constant dense<0.000000e+00> : vector<16xf32>
    %103 = vector.multi_reduction <add>, %102, %cst_70 [1] : vector<16x16xf32> to vector<16xf32>
    %104 = vector.shape_cast %103 : vector<16xf32> to vector<16x1xf32>
    %105 = tpu.reciprocal %104 {approx = true} : vector<16x1xf32> -> vector<16x1xf32>
    %106 = vector.broadcast %105 : vector<16x1xf32> to vector<16x16xf32>
    %107 = arith.mulf %102, %106 : vector<16x16xf32>
    %cst_71 = arith.constant dense<0.000000e+00> : vector<16x32xf32>
    %108 = tpu.matmul %107, %93, %cst_71 {dimension_numbers = #tpu.dot_dimension_numbers<[1], [0], [0], [1], [0, 0, 1, 1], [], []>} : vector<16x16xf32>, vector<16x32xf32>, vector<16x32xf32> -> vector<16x32xf32>
    %c1_72 = arith.constant 1 : index
    %c0_73 = arith.constant 0 : index
    %c0_74 = arith.constant 0 : index
    %109 = vector.load %arg13[%c1_72, %c0_73, %c0_74] : memref<2x32x64xf32, #tpu.memory_space<vmem>>, vector<1x32x64xf32>
    %110 = vector.shape_cast %109 : vector<1x32x64xf32> to vector<32x64xf32>
    %cst_75 = arith.constant dense<0.000000e+00> : vector<16x64xf32>
    %111 = tpu.matmul %108, %110, %cst_75 {dimension_numbers = #tpu.dot_dimension_numbers<[1], [0], [0], [1], [0, 0, 1, 1], [], []>} : vector<16x32xf32>, vector<32x64xf32>, vector<16x64xf32> -> vector<16x64xf32>
    %112 = arith.addf %72, %111 : vector<16x64xf32>
    %113 = arith.addf %7, %112 : vector<16x64xf32>
    %c0_76 = arith.constant 0 : index
    %c0_77 = arith.constant 0 : index
    %114 = vector.load %arg14[%c0_76, %c0_77] : memref<1x64xf32, #tpu.memory_space<vmem>>, vector<1x64xf32>
    %115 = vector.broadcast %114 : vector<1x64xf32> to vector<16x64xf32>
    %116 = arith.addf %113, %115 : vector<16x64xf32>
    %c0_78 = arith.constant 0 : index
    %c0_79 = arith.constant 0 : index
    %117 = vector.load %arg15[%c0_78, %c0_79] : memref<1x64xf32, #tpu.memory_space<vmem>>, vector<1x64xf32>
    %c0_80 = arith.constant 0 : index
    %c0_81 = arith.constant 0 : index
    %118 = vector.load %arg16[%c0_80, %c0_81] : memref<1x64xf32, #tpu.memory_space<vmem>>, vector<1x64xf32>
    %cst_82 = arith.constant dense<0.000000e+00> : vector<16xf32>
    %119 = vector.multi_reduction <add>, %116, %cst_82 [1] : vector<16x64xf32> to vector<16xf32>
    %120 = vector.shape_cast %119 : vector<16xf32> to vector<16x1xf32>
    %cst_83 = arith.constant 6.400000e+01 : f32
    %121 = vector.broadcast %cst_83 : f32 to vector<16x1xf32>
    %122 = arith.divf %120, %121 : vector<16x1xf32>
    %123 = vector.broadcast %122 : vector<16x1xf32> to vector<16x64xf32>
    %124 = arith.subf %116, %123 : vector<16x64xf32>
    %125 = arith.mulf %124, %124 : vector<16x64xf32>
    %cst_84 = arith.constant dense<0.000000e+00> : vector<16xf32>
    %126 = vector.multi_reduction <add>, %125, %cst_84 [1] : vector<16x64xf32> to vector<16xf32>
    %127 = vector.shape_cast %126 : vector<16xf32> to vector<16x1xf32>
    %cst_85 = arith.constant 6.400000e+01 : f32
    %128 = vector.broadcast %cst_85 : f32 to vector<16x1xf32>
    %129 = arith.divf %127, %128 : vector<16x1xf32>
    %130 = vector.broadcast %122 : vector<16x1xf32> to vector<16x64xf32>
    %131 = arith.subf %116, %130 : vector<16x64xf32>
    %cst_86 = arith.constant 9.99999997E-7 : f32
    %132 = vector.broadcast %cst_86 : f32 to vector<16x1xf32>
    %133 = arith.addf %129, %132 : vector<16x1xf32>
    %134 = math.rsqrt %133 : vector<16x1xf32>
    %135 = vector.broadcast %134 : vector<16x1xf32> to vector<16x64xf32>
    %136 = arith.mulf %131, %135 : vector<16x64xf32>
    %137 = vector.broadcast %117 : vector<1x64xf32> to vector<16x64xf32>
    %138 = arith.mulf %136, %137 : vector<16x64xf32>
    %139 = vector.broadcast %118 : vector<1x64xf32> to vector<16x64xf32>
    %140 = arith.addf %138, %139 : vector<16x64xf32>
    %c0_87 = arith.constant 0 : index
    %c0_88 = arith.constant 0 : index
    %141 = vector.load %arg17[%c0_87, %c0_88] : memref<64x128xf32, #tpu.memory_space<vmem>>, vector<64x128xf32>
    %cst_89 = arith.constant dense<0.000000e+00> : vector<16x128xf32>
    %142 = tpu.matmul %140, %141, %cst_89 {dimension_numbers = #tpu.dot_dimension_numbers<[1], [0], [0], [1], [0, 0, 1, 1], [], []>} : vector<16x64xf32>, vector<64x128xf32>, vector<16x128xf32> -> vector<16x128xf32>
    %c0_90 = arith.constant 0 : index
    %c0_91 = arith.constant 0 : index
    %143 = vector.load %arg18[%c0_90, %c0_91] : memref<1x128xf32, #tpu.memory_space<vmem>>, vector<1x128xf32>
    %144 = vector.broadcast %143 : vector<1x128xf32> to vector<16x128xf32>
    %145 = arith.addf %142, %144 : vector<16x128xf32>
    %146 = arith.mulf %145, %145 : vector<16x128xf32>
    %147 = arith.mulf %145, %146 : vector<16x128xf32>
    %cst_92 = arith.constant 4.471500e-02 : f32
    %148 = vector.broadcast %cst_92 : f32 to vector<16x128xf32>
    %149 = arith.mulf %148, %147 : vector<16x128xf32>
    %150 = arith.addf %145, %149 : vector<16x128xf32>
    %cst_93 = arith.constant 0.797884583 : f32
    %151 = vector.broadcast %cst_93 : f32 to vector<16x128xf32>
    %152 = arith.mulf %151, %150 : vector<16x128xf32>
    %153 = math.tanh %152 : vector<16x128xf32>
    %cst_94 = arith.constant 1.000000e+00 : f32
    %154 = vector.broadcast %cst_94 : f32 to vector<16x128xf32>
    %155 = arith.addf %154, %153 : vector<16x128xf32>
    %cst_95 = arith.constant 5.000000e-01 : f32
    %156 = vector.broadcast %cst_95 : f32 to vector<16x128xf32>
    %157 = arith.mulf %156, %155 : vector<16x128xf32>
    %158 = arith.mulf %145, %157 : vector<16x128xf32>
    %c0_96 = arith.constant 0 : index
    %c0_97 = arith.constant 0 : index
    %159 = vector.load %arg19[%c0_96, %c0_97] : memref<128x64xf32, #tpu.memory_space<vmem>>, vector<128x64xf32>
    %cst_98 = arith.constant dense<0.000000e+00> : vector<16x64xf32>
    %160 = tpu.matmul %158, %159, %cst_98 {dimension_numbers = #tpu.dot_dimension_numbers<[1], [0], [0], [1], [0, 0, 1, 1], [], []>} : vector<16x128xf32>, vector<128x64xf32>, vector<16x64xf32> -> vector<16x64xf32>
    %161 = arith.addf %116, %160 : vector<16x64xf32>
    %c0_99 = arith.constant 0 : index
    %c0_100 = arith.constant 0 : index
    %162 = vector.load %arg20[%c0_99, %c0_100] : memref<1x64xf32, #tpu.memory_space<vmem>>, vector<1x64xf32>
    %163 = vector.broadcast %162 : vector<1x64xf32> to vector<16x64xf32>
    %164 = arith.addf %161, %163 : vector<16x64xf32>
    %c0_101 = arith.constant 0 : index
    %c0_102 = arith.constant 0 : index
    %165 = vector.load %arg21[%c0_101, %c0_102] : memref<64x32xf32, #tpu.memory_space<vmem>>, vector<64x32xf32>
    %cst_103 = arith.constant dense<0.000000e+00> : vector<16x32xf32>
    %166 = tpu.matmul %164, %165, %cst_103 {dimension_numbers = #tpu.dot_dimension_numbers<[1], [0], [0], [1], [0, 0, 1, 1], [], []>} : vector<16x64xf32>, vector<64x32xf32>, vector<16x32xf32> -> vector<16x32xf32>
    %c0_104 = arith.constant 0 : index
    %c0_105 = arith.constant 0 : index
    %167 = vector.load %arg22[%c0_104, %c0_105] : memref<1x32xf32, #tpu.memory_space<vmem>>, vector<1x32xf32>
    %168 = vector.broadcast %167 : vector<1x32xf32> to vector<16x32xf32>
    %169 = arith.addf %166, %168 : vector<16x32xf32>
    %c0_106 = arith.constant 0 : index
    %c0_107 = arith.constant 0 : index
    %170 = vector.load %arg23[%c0_106, %c0_107] : memref<1x32xf32, #tpu.memory_space<vmem>>, vector<1x32xf32>
    %c0_108 = arith.constant 0 : index
    %c0_109 = arith.constant 0 : index
    %171 = vector.load %arg24[%c0_108, %c0_109] : memref<1x32xf32, #tpu.memory_space<vmem>>, vector<1x32xf32>
    %cst_110 = arith.constant dense<0.000000e+00> : vector<16xf32>
    %172 = vector.multi_reduction <add>, %169, %cst_110 [1] : vector<16x32xf32> to vector<16xf32>
    %173 = vector.shape_cast %172 : vector<16xf32> to vector<16x1xf32>
    %cst_111 = arith.constant 3.200000e+01 : f32
    %174 = vector.broadcast %cst_111 : f32 to vector<16x1xf32>
    %175 = arith.divf %173, %174 : vector<16x1xf32>
    %176 = vector.broadcast %175 : vector<16x1xf32> to vector<16x32xf32>
    %177 = arith.subf %169, %176 : vector<16x32xf32>
    %178 = arith.mulf %177, %177 : vector<16x32xf32>
    %cst_112 = arith.constant dense<0.000000e+00> : vector<16xf32>
    %179 = vector.multi_reduction <add>, %178, %cst_112 [1] : vector<16x32xf32> to vector<16xf32>
    %180 = vector.shape_cast %179 : vector<16xf32> to vector<16x1xf32>
    %cst_113 = arith.constant 3.200000e+01 : f32
    %181 = vector.broadcast %cst_113 : f32 to vector<16x1xf32>
    %182 = arith.divf %180, %181 : vector<16x1xf32>
    %183 = vector.broadcast %175 : vector<16x1xf32> to vector<16x32xf32>
    %184 = arith.subf %169, %183 : vector<16x32xf32>
    %cst_114 = arith.constant 9.99999997E-7 : f32
    %185 = vector.broadcast %cst_114 : f32 to vector<16x1xf32>
    %186 = arith.addf %182, %185 : vector<16x1xf32>
    %187 = math.rsqrt %186 : vector<16x1xf32>
    %188 = vector.broadcast %187 : vector<16x1xf32> to vector<16x32xf32>
    %189 = arith.mulf %184, %188 : vector<16x32xf32>
    %190 = vector.broadcast %170 : vector<1x32xf32> to vector<16x32xf32>
    %191 = arith.mulf %189, %190 : vector<16x32xf32>
    %192 = vector.broadcast %171 : vector<1x32xf32> to vector<16x32xf32>
    %193 = arith.addf %191, %192 : vector<16x32xf32>
    %c0_115 = arith.constant 0 : index
    %c0_116 = arith.constant 0 : index
    %c0_117 = arith.constant 0 : index
    %194 = vector.load %arg25[%c0_115, %c0_116, %c0_117] : memref<4x32x16xf32, #tpu.memory_space<vmem>>, vector<1x32x16xf32>
    %195 = vector.shape_cast %194 : vector<1x32x16xf32> to vector<32x16xf32>
    %cst_118 = arith.constant dense<0.000000e+00> : vector<16x16xf32>
    %196 = tpu.matmul %193, %195, %cst_118 {dimension_numbers = #tpu.dot_dimension_numbers<[1], [0], [0], [1], [0, 0, 1, 1], [], []>} : vector<16x32xf32>, vector<32x16xf32>, vector<16x16xf32> -> vector<16x16xf32>
    %c0_119 = arith.constant 0 : index
    %c0_120 = arith.constant 0 : index
    %197 = vector.load %arg26[%c0_119, %c0_120] : memref<1x16xf32, #tpu.memory_space<vmem>>, vector<1x16xf32>
    %198 = vector.broadcast %197 : vector<1x16xf32> to vector<16x16xf32>
    %199 = arith.addf %196, %198 : vector<16x16xf32>
    %200 = arith.mulf %199, %199 : vector<16x16xf32>
    %201 = arith.mulf %199, %200 : vector<16x16xf32>
    %cst_121 = arith.constant 4.471500e-02 : f32
    %202 = vector.broadcast %cst_121 : f32 to vector<16x16xf32>
    %203 = arith.mulf %202, %201 : vector<16x16xf32>
    %204 = arith.addf %199, %203 : vector<16x16xf32>
    %cst_122 = arith.constant 0.797884583 : f32
    %205 = vector.broadcast %cst_122 : f32 to vector<16x16xf32>
    %206 = arith.mulf %205, %204 : vector<16x16xf32>
    %207 = math.tanh %206 : vector<16x16xf32>
    %cst_123 = arith.constant 1.000000e+00 : f32
    %208 = vector.broadcast %cst_123 : f32 to vector<16x16xf32>
    %209 = arith.addf %208, %207 : vector<16x16xf32>
    %cst_124 = arith.constant 5.000000e-01 : f32
    %210 = vector.broadcast %cst_124 : f32 to vector<16x16xf32>
    %211 = arith.mulf %210, %209 : vector<16x16xf32>
    %212 = arith.mulf %199, %211 : vector<16x16xf32>
    %c0_125 = arith.constant 0 : index
    %c0_126 = arith.constant 0 : index
    %213 = vector.load %arg27[%c0_125, %c0_126] : memref<16x128xf32, #tpu.memory_space<vmem>>, vector<16x128xf32>
    %cst_127 = arith.constant dense<0.000000e+00> : vector<16x128xf32>
    %214 = tpu.matmul %212, %213, %cst_127 {dimension_numbers = #tpu.dot_dimension_numbers<[1], [0], [0], [1], [0, 0, 1, 1], [], []>} : vector<16x16xf32>, vector<16x128xf32>, vector<16x128xf32> -> vector<16x128xf32>
    %c0_128 = arith.constant 0 : index
    %c0_129 = arith.constant 0 : index
    %215 = vector.load %arg28[%c0_128, %c0_129] : memref<1x128xf32, #tpu.memory_space<vmem>>, vector<1x128xf32>
    %216 = vector.broadcast %215 : vector<1x128xf32> to vector<16x128xf32>
    %217 = arith.addf %214, %216 : vector<16x128xf32>
    %c0_130 = arith.constant 0 : index
    %c0_131 = arith.constant 0 : index
    %218 = vector.load %arg29[%c0_130, %c0_131] : memref<16x512xf32, #tpu.memory_space<vmem>>, vector<16x128xf32>
    tpu.vector_store %arg29[%c0_130, %c0_131], %217 {strides = array<i32>} : memref<16x512xf32, #tpu.memory_space<vmem>>, vector<16x128xf32>,
    %c1_132 = arith.constant 1 : index
    %c0_133 = arith.constant 0 : index
    %c0_134 = arith.constant 0 : index
    %219 = vector.load %arg25[%c1_132, %c0_133, %c0_134] : memref<4x32x16xf32, #tpu.memory_space<vmem>>, vector<1x32x16xf32>
    %220 = vector.shape_cast %219 : vector<1x32x16xf32> to vector<32x16xf32>
    %cst_135 = arith.constant dense<0.000000e+00> : vector<16x16xf32>
    %221 = tpu.matmul %193, %220, %cst_135 {dimension_numbers = #tpu.dot_dimension_numbers<[1], [0], [0], [1], [0, 0, 1, 1], [], []>} : vector<16x32xf32>, vector<32x16xf32>, vector<16x16xf32> -> vector<16x16xf32>
    %c0_136 = arith.constant 0 : index
    %c0_137 = arith.constant 0 : index
    %222 = vector.load %arg26[%c0_136, %c0_137] : memref<1x16xf32, #tpu.memory_space<vmem>>, vector<1x16xf32>
    %223 = vector.broadcast %222 : vector<1x16xf32> to vector<16x16xf32>
    %224 = arith.addf %221, %223 : vector<16x16xf32>
    %225 = arith.mulf %224, %224 : vector<16x16xf32>
    %226 = arith.mulf %224, %225 : vector<16x16xf32>
    %cst_138 = arith.constant 4.471500e-02 : f32
    %227 = vector.broadcast %cst_138 : f32 to vector<16x16xf32>
    %228 = arith.mulf %227, %226 : vector<16x16xf32>
    %229 = arith.addf %224, %228 : vector<16x16xf32>
    %cst_139 = arith.constant 0.797884583 : f32
    %230 = vector.broadcast %cst_139 : f32 to vector<16x16xf32>
    %231 = arith.mulf %230, %229 : vector<16x16xf32>
    %232 = math.tanh %231 : vector<16x16xf32>
    %cst_140 = arith.constant 1.000000e+00 : f32
    %233 = vector.broadcast %cst_140 : f32 to vector<16x16xf32>
    %234 = arith.addf %233, %232 : vector<16x16xf32>
    %cst_141 = arith.constant 5.000000e-01 : f32
    %235 = vector.broadcast %cst_141 : f32 to vector<16x16xf32>
    %236 = arith.mulf %235, %234 : vector<16x16xf32>
    %237 = arith.mulf %224, %236 : vector<16x16xf32>
    %c0_142 = arith.constant 0 : index
    %c0_143 = arith.constant 0 : index
    %238 = vector.load %arg27[%c0_142, %c0_143] : memref<16x128xf32, #tpu.memory_space<vmem>>, vector<16x128xf32>
    %cst_144 = arith.constant dense<0.000000e+00> : vector<16x128xf32>
    %239 = tpu.matmul %237, %238, %cst_144 {dimension_numbers = #tpu.dot_dimension_numbers<[1], [0], [0], [1], [0, 0, 1, 1], [], []>} : vector<16x16xf32>, vector<16x128xf32>, vector<16x128xf32> -> vector<16x128xf32>
    %c0_145 = arith.constant 0 : index
    %c0_146 = arith.constant 0 : index
    %240 = vector.load %arg28[%c0_145, %c0_146] : memref<1x128xf32, #tpu.memory_space<vmem>>, vector<1x128xf32>
    %241 = vector.broadcast %240 : vector<1x128xf32> to vector<16x128xf32>
    %242 = arith.addf %239, %241 : vector<16x128xf32>
    %c0_147 = arith.constant 0 : index
    %c128 = arith.constant 128 : index
    %243 = vector.load %arg29[%c0_147, %c128] : memref<16x512xf32, #tpu.memory_space<vmem>>, vector<16x128xf32>
    tpu.vector_store %arg29[%c0_147, %c128], %242 {strides = array<i32>} : memref<16x512xf32, #tpu.memory_space<vmem>>, vector<16x128xf32>,
    %c2 = arith.constant 2 : index
    %c0_148 = arith.constant 0 : index
    %c0_149 = arith.constant 0 : index
    %244 = vector.load %arg25[%c2, %c0_148, %c0_149] : memref<4x32x16xf32, #tpu.memory_space<vmem>>, vector<1x32x16xf32>
    %245 = vector.shape_cast %244 : vector<1x32x16xf32> to vector<32x16xf32>
    %cst_150 = arith.constant dense<0.000000e+00> : vector<16x16xf32>
    %246 = tpu.matmul %193, %245, %cst_150 {dimension_numbers = #tpu.dot_dimension_numbers<[1], [0], [0], [1], [0, 0, 1, 1], [], []>} : vector<16x32xf32>, vector<32x16xf32>, vector<16x16xf32> -> vector<16x16xf32>
    %c0_151 = arith.constant 0 : index
    %c0_152 = arith.constant 0 : index
    %247 = vector.load %arg26[%c0_151, %c0_152] : memref<1x16xf32, #tpu.memory_space<vmem>>, vector<1x16xf32>
    %248 = vector.broadcast %247 : vector<1x16xf32> to vector<16x16xf32>
    %249 = arith.addf %246, %248 : vector<16x16xf32>
    %250 = arith.mulf %249, %249 : vector<16x16xf32>
    %251 = arith.mulf %249, %250 : vector<16x16xf32>
    %cst_153 = arith.constant 4.471500e-02 : f32
    %252 = vector.broadcast %cst_153 : f32 to vector<16x16xf32>
    %253 = arith.mulf %252, %251 : vector<16x16xf32>
    %254 = arith.addf %249, %253 : vector<16x16xf32>
    %cst_154 = arith.constant 0.797884583 : f32
    %255 = vector.broadcast %cst_154 : f32 to vector<16x16xf32>
    %256 = arith.mulf %255, %254 : vector<16x16xf32>
    %257 = math.tanh %256 : vector<16x16xf32>
    %cst_155 = arith.constant 1.000000e+00 : f32
    %258 = vector.broadcast %cst_155 : f32 to vector<16x16xf32>
    %259 = arith.addf %258, %257 : vector<16x16xf32>
    %cst_156 = arith.constant 5.000000e-01 : f32
    %260 = vector.broadcast %cst_156 : f32 to vector<16x16xf32>
    %261 = arith.mulf %260, %259 : vector<16x16xf32>
    %262 = arith.mulf %249, %261 : vector<16x16xf32>
    %c0_157 = arith.constant 0 : index
    %c0_158 = arith.constant 0 : index
    %263 = vector.load %arg27[%c0_157, %c0_158] : memref<16x128xf32, #tpu.memory_space<vmem>>, vector<16x128xf32>
    %cst_159 = arith.constant dense<0.000000e+00> : vector<16x128xf32>
    %264 = tpu.matmul %262, %263, %cst_159 {dimension_numbers = #tpu.dot_dimension_numbers<[1], [0], [0], [1], [0, 0, 1, 1], [], []>} : vector<16x16xf32>, vector<16x128xf32>, vector<16x128xf32> -> vector<16x128xf32>
    %c0_160 = arith.constant 0 : index
    %c0_161 = arith.constant 0 : index
    %265 = vector.load %arg28[%c0_160, %c0_161] : memref<1x128xf32, #tpu.memory_space<vmem>>, vector<1x128xf32>
    %266 = vector.broadcast %265 : vector<1x128xf32> to vector<16x128xf32>
    %267 = arith.addf %264, %266 : vector<16x128xf32>
    %c0_162 = arith.constant 0 : index
    %c256 = arith.constant 256 : index
    %268 = vector.load %arg29[%c0_162, %c256] : memref<16x512xf32, #tpu.memory_space<vmem>>, vector<16x128xf32>
    tpu.vector_store %arg29[%c0_162, %c256], %267 {strides = array<i32>} : memref<16x512xf32, #tpu.memory_space<vmem>>, vector<16x128xf32>,
    %c3 = arith.constant 3 : index
    %c0_163 = arith.constant 0 : index
    %c0_164 = arith.constant 0 : index
    %269 = vector.load %arg25[%c3, %c0_163, %c0_164] : memref<4x32x16xf32, #tpu.memory_space<vmem>>, vector<1x32x16xf32>
    %270 = vector.shape_cast %269 : vector<1x32x16xf32> to vector<32x16xf32>
    %cst_165 = arith.constant dense<0.000000e+00> : vector<16x16xf32>
    %271 = tpu.matmul %193, %270, %cst_165 {dimension_numbers = #tpu.dot_dimension_numbers<[1], [0], [0], [1], [0, 0, 1, 1], [], []>} : vector<16x32xf32>, vector<32x16xf32>, vector<16x16xf32> -> vector<16x16xf32>
    %c0_166 = arith.constant 0 : index
    %c0_167 = arith.constant 0 : index
    %272 = vector.load %arg26[%c0_166, %c0_167] : memref<1x16xf32, #tpu.memory_space<vmem>>, vector<1x16xf32>
    %273 = vector.broadcast %272 : vector<1x16xf32> to vector<16x16xf32>
    %274 = arith.addf %271, %273 : vector<16x16xf32>
    %275 = arith.mulf %274, %274 : vector<16x16xf32>
    %276 = arith.mulf %274, %275 : vector<16x16xf32>
    %cst_168 = arith.constant 4.471500e-02 : f32
    %277 = vector.broadcast %cst_168 : f32 to vector<16x16xf32>
    %278 = arith.mulf %277, %276 : vector<16x16xf32>
    %279 = arith.addf %274, %278 : vector<16x16xf32>
    %cst_169 = arith.constant 0.797884583 : f32
    %280 = vector.broadcast %cst_169 : f32 to vector<16x16xf32>
    %281 = arith.mulf %280, %279 : vector<16x16xf32>
    %282 = math.tanh %281 : vector<16x16xf32>
    %cst_170 = arith.constant 1.000000e+00 : f32
    %283 = vector.broadcast %cst_170 : f32 to vector<16x16xf32>
    %284 = arith.addf %283, %282 : vector<16x16xf32>
    %cst_171 = arith.constant 5.000000e-01 : f32
    %285 = vector.broadcast %cst_171 : f32 to vector<16x16xf32>
    %286 = arith.mulf %285, %284 : vector<16x16xf32>
    %287 = arith.mulf %274, %286 : vector<16x16xf32>
    %c0_172 = arith.constant 0 : index
    %c0_173 = arith.constant 0 : index
    %288 = vector.load %arg27[%c0_172, %c0_173] : memref<16x128xf32, #tpu.memory_space<vmem>>, vector<16x128xf32>
    %cst_174 = arith.constant dense<0.000000e+00> : vector<16x128xf32>
    %289 = tpu.matmul %287, %288, %cst_174 {dimension_numbers = #tpu.dot_dimension_numbers<[1], [0], [0], [1], [0, 0, 1, 1], [], []>} : vector<16x16xf32>, vector<16x128xf32>, vector<16x128xf32> -> vector<16x128xf32>
    %c0_175 = arith.constant 0 : index
    %c0_176 = arith.constant 0 : index
    %290 = vector.load %arg28[%c0_175, %c0_176] : memref<1x128xf32, #tpu.memory_space<vmem>>, vector<1x128xf32>
    %291 = vector.broadcast %290 : vector<1x128xf32> to vector<16x128xf32>
    %292 = arith.addf %289, %291 : vector<16x128xf32>
    %c0_177 = arith.constant 0 : index
    %c384 = arith.constant 384 : index
    %293 = vector.load %arg29[%c0_177, %c384] : memref<16x512xf32, #tpu.memory_space<vmem>>, vector<16x128xf32>
    tpu.vector_store %arg29[%c0_177, %c384], %292 {strides = array<i32>} : memref<16x512xf32, #tpu.memory_space<vmem>>, vector<16x128xf32>,
    return
  }
  func.func @transform_0(%arg0: i32) -> (i32, i32) {
    %c0_i32 = arith.constant 0 : i32
    %c0_i32_0 = arith.constant 0 : i32
    return %arg0, %c0_i32 : i32, i32
  }
  func.func @transform_1(%arg0: i32) -> (i32, i32) {
    %c0_i32 = arith.constant 0 : i32
    %c0_i32_0 = arith.constant 0 : i32
    %c0_i32_1 = arith.constant 0 : i32
    return %c0_i32, %c0_i32_0 : i32, i32
  }
  func.func @transform_2(%arg0: i32) -> (i32, i32) {
    %c0_i32 = arith.constant 0 : i32
    %c0_i32_0 = arith.constant 0 : i32
    %c0_i32_1 = arith.constant 0 : i32
    return %c0_i32, %c0_i32_0 : i32, i32
  }
  func.func @transform_3(%arg0: i32) -> (i32, i32) {
    %c0_i32 = arith.constant 0 : i32
    %c0_i32_0 = arith.constant 0 : i32
    %c0_i32_1 = arith.constant 0 : i32
    return %c0_i32, %c0_i32_0 : i32, i32
  }
  func.func @transform_4(%arg0: i32) -> (i32, i32) {
    %c0_i32 = arith.constant 0 : i32
    %c0_i32_0 = arith.constant 0 : i32
    %c0_i32_1 = arith.constant 0 : i32
    return %c0_i32, %c0_i32_0 : i32, i32
  }
  func.func @transform_5(%arg0: i32) -> (i32, i32) {
    %c0_i32 = arith.constant 0 : i32
    %c0_i32_0 = arith.constant 0 : i32
    %c0_i32_1 = arith.constant 0 : i32
    return %c0_i32, %c0_i32_0 : i32, i32
  }
  func.func @transform_6(%arg0: i32) -> (i32, i32, i32) {
    %c0_i32 = arith.constant 0 : i32
    %c0_i32_0 = arith.constant 0 : i32
    %c0_i32_1 = arith.constant 0 : i32
    %c0_i32_2 = arith.constant 0 : i32
    return %c0_i32, %c0_i32_0, %c0_i32_1 : i32, i32, i32
  }
  func.func @transform_7(%arg0: i32) -> (i32, i32, i32) {
    %c0_i32 = arith.constant 0 : i32
    %c0_i32_0 = arith.constant 0 : i32
    %c0_i32_1 = arith.constant 0 : i32
    %c0_i32_2 = arith.constant 0 : i32
    return %c0_i32, %c0_i32_0, %c0_i32_1 : i32, i32, i32
  }
  func.func @transform_8(%arg0: i32) -> (i32, i32, i32) {
    %c0_i32 = arith.constant 0 : i32
    %c0_i32_0 = arith.constant 0 : i32
    %c0_i32_1 = arith.constant 0 : i32
    %c0_i32_2 = arith.constant 0 : i32
    return %c0_i32, %c0_i32_0, %c0_i32_1 : i32, i32, i32
  }
  func.func @transform_9(%arg0: i32) -> (i32, i32, i32) {
    %c0_i32 = arith.constant 0 : i32
    %c0_i32_0 = arith.constant 0 : i32
    %c0_i32_1 = arith.constant 0 : i32
    %c0_i32_2 = arith.constant 0 : i32
    return %c0_i32, %c0_i32_0, %c0_i32_1 : i32, i32, i32
  }
  func.func @transform_10(%arg0: i32) -> (i32, i32, i32) {
    %c0_i32 = arith.constant 0 : i32
    %c0_i32_0 = arith.constant 0 : i32
    %c0_i32_1 = arith.constant 0 : i32
    %c0_i32_2 = arith.constant 0 : i32
    return %c0_i32, %c0_i32_0, %c0_i32_1 : i32, i32, i32
  }
  func.func @transform_11(%arg0: i32) -> (i32, i32, i32) {
    %c0_i32 = arith.constant 0 : i32
    %c0_i32_0 = arith.constant 0 : i32
    %c0_i32_1 = arith.constant 0 : i32
    %c0_i32_2 = arith.constant 0 : i32
    return %c0_i32, %c0_i32_0, %c0_i32_1 : i32, i32, i32
  }
  func.func @transform_12(%arg0: i32) -> (i32, i32, i32) {
    %c0_i32 = arith.constant 0 : i32
    %c0_i32_0 = arith.constant 0 : i32
    %c0_i32_1 = arith.constant 0 : i32
    %c0_i32_2 = arith.constant 0 : i32
    return %c0_i32, %c0_i32_0, %c0_i32_1 : i32, i32, i32
  }
  func.func @transform_13(%arg0: i32) -> (i32, i32) {
    %c0_i32 = arith.constant 0 : i32
    %c0_i32_0 = arith.constant 0 : i32
    %c0_i32_1 = arith.constant 0 : i32
    return %c0_i32, %c0_i32_0 : i32, i32
  }
  func.func @transform_14(%arg0: i32) -> (i32, i32) {
    %c0_i32 = arith.constant 0 : i32
    %c0_i32_0 = arith.constant 0 : i32
    %c0_i32_1 = arith.constant 0 : i32
    return %c0_i32, %c0_i32_0 : i32, i32
  }
  func.func @transform_15(%arg0: i32) -> (i32, i32) {
    %c0_i32 = arith.constant 0 : i32
    %c0_i32_0 = arith.constant 0 : i32
    %c0_i32_1 = arith.constant 0 : i32
    return %c0_i32, %c0_i32_0 : i32, i32
  }
  func.func @transform_16(%arg0: i32) -> (i32, i32) {
    %c0_i32 = arith.constant 0 : i32
    %c0_i32_0 = arith.constant 0 : i32
    %c0_i32_1 = arith.constant 0 : i32
    return %c0_i32, %c0_i32_0 : i32, i32
  }
  func.func @transform_17(%arg0: i32) -> (i32, i32) {
    %c0_i32 = arith.constant 0 : i32
    %c0_i32_0 = arith.constant 0 : i32
    %c0_i32_1 = arith.constant 0 : i32
    return %c0_i32, %c0_i32_0 : i32, i32
  }
  func.func @transform_18(%arg0: i32) -> (i32, i32) {
    %c0_i32 = arith.constant 0 : i32
    %c0_i32_0 = arith.constant 0 : i32
    %c0_i32_1 = arith.constant 0 : i32
    return %c0_i32, %c0_i32_0 : i32, i32
  }
  func.func @transform_19(%arg0: i32) -> (i32, i32) {
    %c0_i32 = arith.constant 0 : i32
    %c0_i32_0 = arith.constant 0 : i32
    %c0_i32_1 = arith.constant 0 : i32
    return %c0_i32, %c0_i32_0 : i32, i32
  }
  func.func @transform_20(%arg0: i32) -> (i32, i32) {
    %c0_i32 = arith.constant 0 : i32
    %c0_i32_0 = arith.constant 0 : i32
    %c0_i32_1 = arith.constant 0 : i32
    return %c0_i32, %c0_i32_0 : i32, i32
  }
  func.func @transform_21(%arg0: i32) -> (i32, i32) {
    %c0_i32 = arith.constant 0 : i32
    %c0_i32_0 = arith.constant 0 : i32
    %c0_i32_1 = arith.constant 0 : i32
    return %c0_i32, %c0_i32_0 : i32, i32
  }
  func.func @transform_22(%arg0: i32) -> (i32, i32) {
    %c0_i32 = arith.constant 0 : i32
    %c0_i32_0 = arith.constant 0 : i32
    %c0_i32_1 = arith.constant 0 : i32
    return %c0_i32, %c0_i32_0 : i32, i32
  }
  func.func @transform_23(%arg0: i32) -> (i32, i32) {
    %c0_i32 = arith.constant 0 : i32
    %c0_i32_0 = arith.constant 0 : i32
    %c0_i32_1 = arith.constant 0 : i32
    return %c0_i32, %c0_i32_0 : i32, i32
  }
  func.func @transform_24(%arg0: i32) -> (i32, i32, i32) {
    %c0_i32 = arith.constant 0 : i32
    %c0_i32_0 = arith.constant 0 : i32
    %c0_i32_1 = arith.constant 0 : i32
    %c0_i32_2 = arith.constant 0 : i32
    return %c0_i32, %c0_i32_0, %c0_i32_1 : i32, i32, i32
  }
  func.func @transform_25(%arg0: i32) -> (i32, i32) {
    %c0_i32 = arith.constant 0 : i32
    %c0_i32_0 = arith.constant 0 : i32
    %c0_i32_1 = arith.constant 0 : i32
    return %c0_i32, %c0_i32_0 : i32, i32
  }
  func.func @transform_26(%arg0: i32) -> (i32, i32) {
    %c0_i32 = arith.constant 0 : i32
    %c0_i32_0 = arith.constant 0 : i32
    %c0_i32_1 = arith.constant 0 : i32
    return %c0_i32, %c0_i32_0 : i32, i32
  }
  func.func @transform_27(%arg0: i32) -> (i32, i32) {
    %c0_i32 = arith.constant 0 : i32
    %c0_i32_0 = arith.constant 0 : i32
    %c0_i32_1 = arith.constant 0 : i32
    return %c0_i32, %c0_i32_0 : i32, i32
  }
  func.func @transform_28(%arg0: i32) -> (i32, i32) {
    %c0_i32 = arith.constant 0 : i32
    %c0_i32_0 = arith.constant 0 : i32
    return %arg0, %c0_i32 : i32, i32
  }
}

</mosaic_0001>

<llo_original>
// kernel: sam_vit_forward.1
$region0: #{sam_vit_forward.1}
  #allocation0 [shape = 'u32[]', space=smem, size = 0x4, offset = 0x4, fixed_abs, tag = 'smem constant byte address 0x4 - core index']
  #allocation1 [shape = 'u32[72,128]{1,0:T(1,128)}', space=vmem, size = 0x9000, scoped, tag = 'internal scratch']
  %s0 = inlined_call_operand.vmem [shape: f32[32,192], index: 0, kind: input, shape index: {}]
  %s1 = inlined_call_operand.vmem [shape: f32[192,64], index: 1, kind: input, shape index: {}]
  %s2 = inlined_call_operand.vmem [shape: f32[1,64], index: 2, kind: input, shape index: {}]
  %s3 = inlined_call_operand.vmem [shape: f32[16,64], index: 3, kind: input, shape index: {}]
  %s4 = inlined_call_operand.vmem [shape: f32[1,64], index: 4, kind: input, shape index: {}]
  %s5 = inlined_call_operand.vmem [shape: f32[1,64], index: 5, kind: input, shape index: {}]
  %s6 = inlined_call_operand.vmem [shape: f32[2,64,32], index: 6, kind: input, shape index: {}]
  %s7 = inlined_call_operand.vmem [shape: f32[2,1,32], index: 7, kind: input, shape index: {}]
  %s8 = inlined_call_operand.vmem [shape: f32[2,64,32], index: 8, kind: input, shape index: {}]
  %s9 = inlined_call_operand.vmem [shape: f32[2,1,32], index: 9, kind: input, shape index: {}]
  %s10 = inlined_call_operand.vmem [shape: f32[2,64,32], index: 10, kind: input, shape index: {}]
  %s11 = inlined_call_operand.vmem [shape: f32[2,1,32], index: 11, kind: input, shape index: {}]
  %s12 = inlined_call_operand.vmem [shape: f32[2,32,64], index: 12, kind: input, shape index: {}]
  %s13 = inlined_call_operand.vmem [shape: f32[1,64], index: 13, kind: input, shape index: {}]
  %s14 = inlined_call_operand.vmem [shape: f32[1,64], index: 14, kind: input, shape index: {}]
  %s15 = inlined_call_operand.vmem [shape: f32[1,64], index: 15, kind: input, shape index: {}]
  %s16 = inlined_call_operand.vmem [shape: f32[64,128], index: 16, kind: input, shape index: {}]
  %s17 = inlined_call_operand.vmem [shape: f32[1,128], index: 17, kind: input, shape index: {}]
  %s18 = inlined_call_operand.vmem [shape: f32[128,64], index: 18, kind: input, shape index: {}]
  %s19 = inlined_call_operand.vmem [shape: f32[1,64], index: 19, kind: input, shape index: {}]
  %s20 = inlined_call_operand.vmem [shape: f32[64,32], index: 20, kind: input, shape index: {}]
  %s21 = inlined_call_operand.vmem [shape: f32[1,32], index: 21, kind: input, shape index: {}]
  %s22 = inlined_call_operand.vmem [shape: f32[1,32], index: 22, kind: input, shape index: {}]
  %s23 = inlined_call_operand.vmem [shape: f32[1,32], index: 23, kind: input, shape index: {}]
  %s24 = inlined_call_operand.vmem [shape: f32[4,32,16], index: 24, kind: input, shape index: {}]
  %s25 = inlined_call_operand.vmem [shape: f32[1,16], index: 25, kind: input, shape index: {}]
  %s26 = inlined_call_operand.vmem [shape: f32[16,128], index: 26, kind: input, shape index: {}]
  %s27 = inlined_call_operand.vmem [shape: f32[1,128], index: 27, kind: input, shape index: {}]
  %s28 = inlined_call_operand.vmem [shape: f32[32,512], index: 28, kind: output, shape index: {}]
  %s29 = sld [smem:[#allocation0]]
  $region145: #{sam_vit_forward.1} parent=0
    _
  %s31 = ssub.s32 1, %s29
  %s32 = scalar_select 0, %s31, %s29
  loop: start=0, step=1, limit=4
  $region2: #{sam_vit_forward.1} parent=0 // loop_pre_header
    _
  $region3: #{sam_vit_forward.1} parent=0 // loop_header
    %s34 = sphi 0, %s38
    %p35 = scmp.ge.s32.totalorder %s34, 4
    %s44 = sphi 0, %s46
    %s47 = sphi 0, %s44
    %s48 = sphi 0, %s47
    %s64 = sphi 0, %s48
    %s68 = sphi 0, %s68
    %s70 = sphi 0, %s68
    %s71 = sphi 0, %s70
    %s85 = sphi 0, %s71
    %s89 = sphi 0, %s89
    %s91 = sphi 0, %s89
    %s92 = sphi 0, %s91
    %s106 = sphi 0, %s92
    %s110 = sphi 0, %s110
    %s112 = sphi 0, %s110
    %s113 = sphi 0, %s112
    %s127 = sphi 0, %s113
    %s131 = sphi 0, %s131
    %s133 = sphi 0, %s131
    %s134 = sphi 0, %s133
    %s148 = sphi 0, %s134
    %s152 = sphi 0, %s152
    %s154 = sphi 0, %s152
    %s155 = sphi 0, %s154
    %s169 = sphi 0, %s155
    %s173 = sphi 0, %s173
    %s175 = sphi 0, %s173
    %s176 = sphi 0, %s175
    %s190 = sphi 0, %s176
    %s194 = sphi 0, %s194
    %s196 = sphi 0, %s194
    %s197 = sphi 0, %s196
    %s211 = sphi 0, %s197
    %s215 = sphi 0, %s215
    %s217 = sphi 0, %s215
    %s218 = sphi 0, %s217
    %s232 = sphi 0, %s218
    %s236 = sphi 0, %s236
    %s238 = sphi 0, %s236
    %s239 = sphi 0, %s238
    %s253 = sphi 0, %s239
    %s257 = sphi 0, %s257
    %s259 = sphi 0, %s257
    %s260 = sphi 0, %s259
    %s274 = sphi 0, %s260
    %s278 = sphi 0, %s278
    %s280 = sphi 0, %s278
    %s281 = sphi 0, %s280
    %s295 = sphi 0, %s281
    %s299 = sphi 0, %s299
    %s301 = sphi 0, %s299
    %s302 = sphi 0, %s301
    %s316 = sphi 0, %s302
    %s320 = sphi 0, %s320
    %s322 = sphi 0, %s320
    %s323 = sphi 0, %s322
    %s337 = sphi 0, %s323
    %s341 = sphi 0, %s341
    %s343 = sphi 0, %s341
    %s344 = sphi 0, %s343
    %s358 = sphi 0, %s344
    %s362 = sphi 0, %s362
    %s364 = sphi 0, %s362
    %s365 = sphi 0, %s364
    %s379 = sphi 0, %s365
    %s383 = sphi 0, %s383
    %s385 = sphi 0, %s383
    %s386 = sphi 0, %s385
    %s400 = sphi 0, %s386
    %s404 = sphi 0, %s404
    %s406 = sphi 0, %s404
    %s407 = sphi 0, %s406
    %s421 = sphi 0, %s407
    %s425 = sphi 0, %s425
    %s427 = sphi 0, %s425
    %s428 = sphi 0, %s427
    %s442 = sphi 0, %s428
    %s446 = sphi 0, %s446
    %s448 = sphi 0, %s446
    %s449 = sphi 0, %s448
    %s463 = sphi 0, %s449
    %s467 = sphi 0, %s467
    %s469 = sphi 0, %s467
    %s470 = sphi 0, %s469
    %s484 = sphi 0, %s470
    %s488 = sphi 0, %s488
    %s490 = sphi 0, %s488
    %s491 = sphi 0, %s490
    %s505 = sphi 0, %s491
    %s509 = sphi 0, %s509
    %s511 = sphi 0, %s509
    %s512 = sphi 0, %s511
    %s526 = sphi 0, %s512
    %s530 = sphi 0, %s530
    %s532 = sphi 0, %s530
    %s533 = sphi 0, %s532
    %s547 = sphi 0, %s533
    %s551 = sphi 0, %s551
    %s553 = sphi 0, %s551
    %s554 = sphi 0, %s553
    %s568 = sphi 0, %s554
    %s572 = sphi 0, %s572
    %s574 = sphi 0, %s572
    %s575 = sphi 0, %s574
    %s589 = sphi 0, %s575
    %s593 = sphi 0, %s593
    %s595 = sphi 0, %s593
    %s596 = sphi 0, %s595
    %s610 = sphi 0, %s596
    %s614 = sphi 0, %s614
    %s616 = sphi 0, %s614
    %s617 = sphi 0, %s616
    %s631 = sphi 0, %s617
    %s637 = sphi 0, %s639
    %s640 = sphi 0, %s637
    %s641 = sphi 0, %s640
    %s657 = sphi 0, %s641
  $region4: #{sam_vit_forward.1} parent=0 // loop_header_branch
    %37 = sbr.rel (%p35) target = $region8
  $region5: #{sam_vit_forward.1} parent=0 // loop_body
    %s39 = ssub.s32 %s34, 1
    %s40 = ssub.s32 %s34, 2
    %s41 = sadd.s32 %s34, 1
    %s42 = ssub.s32 %s34, %s41
    %p43 = scmp.eq.s32.totalorder %s42, 0
    %s45 = sadd.s32 %s44, 1
    %s46 = scalar_select %p43, %s44, %s45
    %p49 = pneg %p43
    %p50 = scmp.eq.s32.totalorder %s34, 1
    %p51 = por %p49, %p50
    %p52 = scmp.ne.s32.totalorder %s44, %s47
    %p53 = scmp.eq.s32.totalorder %s34, 0
    %p54 = por %p52, %p53
    %p55 = scmp.ne.s32.totalorder %s44, %s47
    %p56 = scmp.eq.s32.totalorder %s39, 1
    %p57 = por %p55, %p56
    %p58 = scmp.ne.s32.totalorder %s47, %s48
    %p59 = scmp.eq.s32.totalorder %s39, 0
    %p60 = por %p58, %p59
    %p61 = scmp.ne.s32.totalorder %s47, %s48
    %p62 = scmp.eq.s32.totalorder %s40, 1
    %p63 = por %p61, %p62
    %p65 = scmp.ne.s32.totalorder %s48, %s64
    %p66 = scmp.eq.s32.totalorder %s40, 0
    %p67 = por %p65, %p66
    %s69 = sadd.s32 %s68, 1
    %p72 = scmp.eq.s32.totalorder %s34, 1
    %p73 = scmp.ne.s32.totalorder %s68, %s70
    %p74 = scmp.eq.s32.totalorder %s34, 0
    %p75 = por %p73, %p74
    %p76 = scmp.ne.s32.totalorder %s68, %s70
    %p77 = scmp.eq.s32.totalorder %s39, 1
    %p78 = por %p76, %p77
    %p79 = scmp.ne.s32.totalorder %s70, %s71
    %p80 = scmp.eq.s32.totalorder %s39, 0
    %p81 = por %p79, %p80
    %p82 = scmp.ne.s32.totalorder %s70, %s71
    %p83 = scmp.eq.s32.totalorder %s40, 1
    %p84 = por %p82, %p83
    %p86 = scmp.ne.s32.totalorder %s71, %s85
    %p87 = scmp.eq.s32.totalorder %s40, 0
    %p88 = por %p86, %p87
    %s90 = sadd.s32 %s89, 1
    %p93 = scmp.eq.s32.totalorder %s34, 1
    %p94 = scmp.ne.s32.totalorder %s89, %s91
    %p95 = scmp.eq.s32.totalorder %s34, 0
    %p96 = por %p94, %p95
    %p97 = scmp.ne.s32.totalorder %s89, %s91
    %p98 = scmp.eq.s32.totalorder %s39, 1
    %p99 = por %p97, %p98
    %p100 = scmp.ne.s32.totalorder %s91, %s92
    %p101 = scmp.eq.s32.totalorder %s39, 0
    %p102 = por %p100, %p101
    %p103 = scmp.ne.s32.totalorder %s91, %s92
    %p104 = scmp.eq.s32.totalorder %s40, 1
    %p105 = por %p103, %p104
    %p107 = scmp.ne.s32.totalorder %s92, %s106
    %p108 = scmp.eq.s32.totalorder %s40, 0
    %p109 = por %p107, %p108
    %s111 = sadd.s32 %s110, 1
    %p114 = scmp.eq.s32.totalorder %s34, 1
    %p115 = scmp.ne.s32.totalorder %s110, %s112
    %p116 = scmp.eq.s32.totalorder %s34, 0
    %p117 = por %p115, %p116
    %p118 = scmp.ne.s32.totalorder %s110, %s112
    %p119 = scmp.eq.s32.totalorder %s39, 1
    %p120 = por %p118, %p119
    %p121 = scmp.ne.s32.totalorder %s112, %s113
    %p122 = scmp.eq.s32.totalorder %s39, 0
    %p123 = por %p121, %p122
    %p124 = scmp.ne.s32.totalorder %s112, %s113
    %p125 = scmp.eq.s32.totalorder %s40, 1
    %p126 = por %p124, %p125
    %p128 = scmp.ne.s32.totalorder %s113, %s127
    %p129 = scmp.eq.s32.totalorder %s40, 0
    %p130 = por %p128, %p129
    %s132 = sadd.s32 %s131, 1
    %p135 = scmp.eq.s32.totalorder %s34, 1
    %p136 = scmp.ne.s32.totalorder %s131, %s133
    %p137 = scmp.eq.s32.totalorder %s34, 0
    %p138 = por %p136, %p137
    %p139 = scmp.ne.s32.totalorder %s131, %s133
    %p140 = scmp.eq.s32.totalorder %s39, 1
    %p141 = por %p139, %p140
    %p142 = scmp.ne.s32.totalorder %s133, %s134
    %p143 = scmp.eq.s32.totalorder %s39, 0
    %p144 = por %p142, %p143
    %p145 = scmp.ne.s32.totalorder %s133, %s134
    %p146 = scmp.eq.s32.totalorder %s40, 1
    %p147 = por %p145, %p146
    %p149 = scmp.ne.s32.totalorder %s134, %s148
    %p150 = scmp.eq.s32.totalorder %s40, 0
    %p151 = por %p149, %p150
    %s153 = sadd.s32 %s152, 1
    %p156 = scmp.eq.s32.totalorder %s34, 1
    %p157 = scmp.ne.s32.totalorder %s152, %s154
    %p158 = scmp.eq.s32.totalorder %s34, 0
    %p159 = por %p157, %p158
    %p160 = scmp.ne.s32.totalorder %s152, %s154
    %p161 = scmp.eq.s32.totalorder %s39, 1
    %p162 = por %p160, %p161
    %p163 = scmp.ne.s32.totalorder %s154, %s155
    %p164 = scmp.eq.s32.totalorder %s39, 0
    %p165 = por %p163, %p164
    %p166 = scmp.ne.s32.totalorder %s154, %s155
    %p167 = scmp.eq.s32.totalorder %s40, 1
    %p168 = por %p166, %p167
    %p170 = scmp.ne.s32.totalorder %s155, %s169
    %p171 = scmp.eq.s32.totalorder %s40, 0
    %p172 = por %p170, %p171
    %s174 = sadd.s32 %s173, 1
    %p177 = scmp.eq.s32.totalorder %s34, 1
    %p178 = scmp.ne.s32.totalorder %s173, %s175
    %p179 = scmp.eq.s32.totalorder %s34, 0
    %p180 = por %p178, %p179
    %p181 = scmp.ne.s32.totalorder %s173, %s175
    %p182 = scmp.eq.s32.totalorder %s39, 1
    %p183 = por %p181, %p182
    %p184 = scmp.ne.s32.totalorder %s175, %s176
    %p185 = scmp.eq.s32.totalorder %s39, 0
    %p186 = por %p184, %p185
    %p187 = scmp.ne.s32.totalorder %s175, %s176
    %p188 = scmp.eq.s32.totalorder %s40, 1
    %p189 = por %p187, %p188
    %p191 = scmp.ne.s32.totalorder %s176, %s190
    %p192 = scmp.eq.s32.totalorder %s40, 0
    %p193 = por %p191, %p192
    %s195 = sadd.s32 %s194, 1
    %p198 = scmp.eq.s32.totalorder %s34, 1
    %p199 = scmp.ne.s32.totalorder %s194, %s196
    %p200 = scmp.eq.s32.totalorder %s34, 0
    %p201 = por %p199, %p200
    %p202 = scmp.ne.s32.totalorder %s194, %s196
    %p203 = scmp.eq.s32.totalorder %s39, 1
    %p204 = por %p202, %p203
    %p205 = scmp.ne.s32.totalorder %s196, %s197
    %p206 = scmp.eq.s32.totalorder %s39, 0
    %p207 = por %p205, %p206
    %p208 = scmp.ne.s32.totalorder %s196, %s197
    %p209 = scmp.eq.s32.totalorder %s40, 1
    %p210 = por %p208, %p209
    %p212 = scmp.ne.s32.totalorder %s197, %s211
    %p213 = scmp.eq.s32.totalorder %s40, 0
    %p214 = por %p212, %p213
    %s216 = sadd.s32 %s215, 1
    %p219 = scmp.eq.s32.totalorder %s34, 1
    %p220 = scmp.ne.s32.totalorder %s215, %s217
    %p221 = scmp.eq.s32.totalorder %s34, 0
    %p222 = por %p220, %p221
    %p223 = scmp.ne.s32.totalorder %s215, %s217
    %p224 = scmp.eq.s32.totalorder %s39, 1
    %p225 = por %p223, %p224
    %p226 = scmp.ne.s32.totalorder %s217, %s218
    %p227 = scmp.eq.s32.totalorder %s39, 0
    %p228 = por %p226, %p227
    %p229 = scmp.ne.s32.totalorder %s217, %s218
    %p230 = scmp.eq.s32.totalorder %s40, 1
    %p231 = por %p229, %p230
    %p233 = scmp.ne.s32.totalorder %s218, %s232
    %p234 = scmp.eq.s32.totalorder %s40, 0
    %p235 = por %p233, %p234
    %s237 = sadd.s32 %s236, 1
    %p240 = scmp.eq.s32.totalorder %s34, 1
    %p241 = scmp.ne.s32.totalorder %s236, %s238
    %p242 = scmp.eq.s32.totalorder %s34, 0
    %p243 = por %p241, %p242
    %p244 = scmp.ne.s32.totalorder %s236, %s238
    %p245 = scmp.eq.s32.totalorder %s39, 1
    %p246 = por %p244, %p245
    %p247 = scmp.ne.s32.totalorder %s238, %s239
    %p248 = scmp.eq.s32.totalorder %s39, 0
    %p249 = por %p247, %p248
    %p250 = scmp.ne.s32.totalorder %s238, %s239
    %p251 = scmp.eq.s32.totalorder %s40, 1
    %p252 = por %p250, %p251
    %p254 = scmp.ne.s32.totalorder %s239, %s253
    %p255 = scmp.eq.s32.totalorder %s40, 0
    %p256 = por %p254, %p255
    %s258 = sadd.s32 %s257, 1
    %p261 = scmp.eq.s32.totalorder %s34, 1
    %p262 = scmp.ne.s32.totalorder %s257, %s259
    %p263 = scmp.eq.s32.totalorder %s34, 0
    %p264 = por %p262, %p263
    %p265 = scmp.ne.s32.totalorder %s257, %s259
    %p266 = scmp.eq.s32.totalorder %s39, 1
    %p267 = por %p265, %p266
    %p268 = scmp.ne.s32.totalorder %s259, %s260
    %p269 = scmp.eq.s32.totalorder %s39, 0
    %p270 = por %p268, %p269
    %p271 = scmp.ne.s32.totalorder %s259, %s260
    %p272 = scmp.eq.s32.totalorder %s40, 1
    %p273 = por %p271, %p272
    %p275 = scmp.ne.s32.totalorder %s260, %s274
    %p276 = scmp.eq.s32.totalorder %s40, 0
    %p277 = por %p275, %p276
    %s279 = sadd.s32 %s278, 1
    %p282 = scmp.eq.s32.totalorder %s34, 1
    %p283 = scmp.ne.s32.totalorder %s278, %s280
    %p284 = scmp.eq.s32.totalorder %s34, 0
    %p285 = por %p283, %p284
    %p286 = scmp.ne.s32.totalorder %s278, %s280
    %p287 = scmp.eq.s32.totalorder %s39, 1
    %p288 = por %p286, %p287
    %p289 = scmp.ne.s32.totalorder %s280, %s281
    %p290 = scmp.eq.s32.totalorder %s39, 0
    %p291 = por %p289, %p290
    %p292 = scmp.ne.s32.totalorder %s280, %s281
    %p293 = scmp.eq.s32.totalorder %s40, 1
    %p294 = por %p292, %p293
    %p296 = scmp.ne.s32.totalorder %s281, %s295
    %p297 = scmp.eq.s32.totalorder %s40, 0
    %p298 = por %p296, %p297
    %s300 = sadd.s32 %s299, 1
    %p303 = scmp.eq.s32.totalorder %s34, 1
    %p304 = scmp.ne.s32.totalorder %s299, %s301
    %p305 = scmp.eq.s32.totalorder %s34, 0
    %p306 = por %p304, %p305
    %p307 = scmp.ne.s32.totalorder %s299, %s301
    %p308 = scmp.eq.s32.totalorder %s39, 1
    %p309 = por %p307, %p308
    %p310 = scmp.ne.s32.totalorder %s301, %s302
    %p311 = scmp.eq.s32.totalorder %s39, 0
    %p312 = por %p310, %p311
    %p313 = scmp.ne.s32.totalorder %s301, %s302
    %p314 = scmp.eq.s32.totalorder %s40, 1
    %p315 = por %p313, %p314
    %p317 = scmp.ne.s32.totalorder %s302, %s316
    %p318 = scmp.eq.s32.totalorder %s40, 0
    %p319 = por %p317, %p318
    %s321 = sadd.s32 %s320, 1
    %p324 = scmp.eq.s32.totalorder %s34, 1
    %p325 = scmp.ne.s32.totalorder %s320, %s322
    %p326 = scmp.eq.s32.totalorder %s34, 0
    %p327 = por %p325, %p326
    %p328 = scmp.ne.s32.totalorder %s320, %s322
    %p329 = scmp.eq.s32.totalorder %s39, 1
    %p330 = por %p328, %p329
    %p331 = scmp.ne.s32.totalorder %s322, %s323
    %p332 = scmp.eq.s32.totalorder %s39, 0
    %p333 = por %p331, %p332
    %p334 = scmp.ne.s32.totalorder %s322, %s323
    %p335 = scmp.eq.s32.totalorder %s40, 1
    %p336 = por %p334, %p335
    %p338 = scmp.ne.s32.totalorder %s323, %s337
    %p339 = scmp.eq.s32.totalorder %s40, 0
    %p340 = por %p338, %p339
    %s342 = sadd.s32 %s341, 1
    %p345 = scmp.eq.s32.totalorder %s34, 1
    %p346 = scmp.ne.s32.totalorder %s341, %s343
    %p347 = scmp.eq.s32.totalorder %s34, 0
    %p348 = por %p346, %p347
    %p349 = scmp.ne.s32.totalorder %s341, %s343
    %p350 = scmp.eq.s32.totalorder %s39, 1
    %p351 = por %p349, %p350
    %p352 = scmp.ne.s32.totalorder %s343, %s344
    %p353 = scmp.eq.s32.totalorder %s39, 0
    %p354 = por %p352, %p353
    %p355 = scmp.ne.s32.totalorder %s343, %s344
    %p356 = scmp.eq.s32.totalorder %s40, 1
    %p357 = por %p355, %p356
    %p359 = scmp.ne.s32.totalorder %s344, %s358
    %p360 = scmp.eq.s32.totalorder %s40, 0
    %p361 = por %p359, %p360
    %s363 = sadd.s32 %s362, 1
    %p366 = scmp.eq.s32.totalorder %s34, 1
    %p367 = scmp.ne.s32.totalorder %s362, %s364
    %p368 = scmp.eq.s32.totalorder %s34, 0
    %p369 = por %p367, %p368
    %p370 = scmp.ne.s32.totalorder %s362, %s364
    %p371 = scmp.eq.s32.totalorder %s39, 1
    %p372 = por %p370, %p371
    %p373 = scmp.ne.s32.totalorder %s364, %s365
    %p374 = scmp.eq.s32.totalorder %s39, 0
    %p375 = por %p373, %p374
    %p376 = scmp.ne.s32.totalorder %s364, %s365
    %p377 = scmp.eq.s32.totalorder %s40, 1
    %p378 = por %p376, %p377
    %p380 = scmp.ne.s32.totalorder %s365, %s379
    %p381 = scmp.eq.s32.totalorder %s40, 0
    %p382 = por %p380, %p381
    %s384 = sadd.s32 %s383, 1
    %p387 = scmp.eq.s32.totalorder %s34, 1
    %p388 = scmp.ne.s32.totalorder %s383, %s385
    %p389 = scmp.eq.s32.totalorder %s34, 0
    %p390 = por %p388, %p389
    %p391 = scmp.ne.s32.totalorder %s383, %s385
    %p392 = scmp.eq.s32.totalorder %s39, 1
    %p393 = por %p391, %p392
    %p394 = scmp.ne.s32.totalorder %s385, %s386
    %p395 = scmp.eq.s32.totalorder %s39, 0
    %p396 = por %p394, %p395
    %p397 = scmp.ne.s32.totalorder %s385, %s386
    %p398 = scmp.eq.s32.totalorder %s40, 1
    %p399 = por %p397, %p398
    %p401 = scmp.ne.s32.totalorder %s386, %s400
    %p402 = scmp.eq.s32.totalorder %s40, 0
    %p403 = por %p401, %p402
    %s405 = sadd.s32 %s404, 1
    %p408 = scmp.eq.s32.totalorder %s34, 1
    %p409 = scmp.ne.s32.totalorder %s404, %s406
    %p410 = scmp.eq.s32.totalorder %s34, 0
    %p411 = por %p409, %p410
    %p412 = scmp.ne.s32.totalorder %s404, %s406
    %p413 = scmp.eq.s32.totalorder %s39, 1
    %p414 = por %p412, %p413
    %p415 = scmp.ne.s32.totalorder %s406, %s407
    %p416 = scmp.eq.s32.totalorder %s39, 0
    %p417 = por %p415, %p416
    %p418 = scmp.ne.s32.totalorder %s406, %s407
    %p419 = scmp.eq.s32.totalorder %s40, 1
    %p420 = por %p418, %p419
    %p422 = scmp.ne.s32.totalorder %s407, %s421
    %p423 = scmp.eq.s32.totalorder %s40, 0
    %p424 = por %p422, %p423
    %s426 = sadd.s32 %s425, 1
    %p429 = scmp.eq.s32.totalorder %s34, 1
    %p430 = scmp.ne.s32.totalorder %s425, %s427
    %p431 = scmp.eq.s32.totalorder %s34, 0
    %p432 = por %p430, %p431
    %p433 = scmp.ne.s32.totalorder %s425, %s427
    %p434 = scmp.eq.s32.totalorder %s39, 1
    %p435 = por %p433, %p434
    %p436 = scmp.ne.s32.totalorder %s427, %s428
    %p437 = scmp.eq.s32.totalorder %s39, 0
    %p438 = por %p436, %p437
    %p439 = scmp.ne.s32.totalorder %s427, %s428
    %p440 = scmp.eq.s32.totalorder %s40, 1
    %p441 = por %p439, %p440
    %p443 = scmp.ne.s32.totalorder %s428, %s442
    %p444 = scmp.eq.s32.totalorder %s40, 0
    %p445 = por %p443, %p444
    %s447 = sadd.s32 %s446, 1
    %p450 = scmp.eq.s32.totalorder %s34, 1
    %p451 = scmp.ne.s32.totalorder %s446, %s448
    %p452 = scmp.eq.s32.totalorder %s34, 0
    %p453 = por %p451, %p452
    %p454 = scmp.ne.s32.totalorder %s446, %s448
    %p455 = scmp.eq.s32.totalorder %s39, 1
    %p456 = por %p454, %p455
    %p457 = scmp.ne.s32.totalorder %s448, %s449
    %p458 = scmp.eq.s32.totalorder %s39, 0
    %p459 = por %p457, %p458
    %p460 = scmp.ne.s32.totalorder %s448, %s449
    %p461 = scmp.eq.s32.totalorder %s40, 1
    %p462 = por %p460, %p461
    %p464 = scmp.ne.s32.totalorder %s449, %s463
    %p465 = scmp.eq.s32.totalorder %s40, 0
    %p466 = por %p464, %p465
    %s468 = sadd.s32 %s467, 1
    %p471 = scmp.eq.s32.totalorder %s34, 1
    %p472 = scmp.ne.s32.totalorder %s467, %s469
    %p473 = scmp.eq.s32.totalorder %s34, 0
    %p474 = por %p472, %p473
    %p475 = scmp.ne.s32.totalorder %s467, %s469
    %p476 = scmp.eq.s32.totalorder %s39, 1
    %p477 = por %p475, %p476
    %p478 = scmp.ne.s32.totalorder %s469, %s470
    %p479 = scmp.eq.s32.totalorder %s39, 0
    %p480 = por %p478, %p479
    %p481 = scmp.ne.s32.totalorder %s469, %s470
    %p482 = scmp.eq.s32.totalorder %s40, 1
    %p483 = por %p481, %p482
    %p485 = scmp.ne.s32.totalorder %s470, %s484
    %p486 = scmp.eq.s32.totalorder %s40, 0
    %p487 = por %p485, %p486
    %s489 = sadd.s32 %s488, 1
    %p492 = scmp.eq.s32.totalorder %s34, 1
    %p493 = scmp.ne.s32.totalorder %s488, %s490
    %p494 = scmp.eq.s32.totalorder %s34, 0
    %p495 = por %p493, %p494
    %p496 = scmp.ne.s32.totalorder %s488, %s490
    %p497 = scmp.eq.s32.totalorder %s39, 1
    %p498 = por %p496, %p497
    %p499 = scmp.ne.s32.totalorder %s490, %s491
    %p500 = scmp.eq.s32.totalorder %s39, 0
    %p501 = por %p499, %p500
    %p502 = scmp.ne.s32.totalorder %s490, %s491
    %p503 = scmp.eq.s32.totalorder %s40, 1
    %p504 = por %p502, %p503
    %p506 = scmp.ne.s32.totalorder %s491, %s505
    %p507 = scmp.eq.s32.totalorder %s40, 0
    %p508 = por %p506, %p507
    %s510 = sadd.s32 %s509, 1
    %p513 = scmp.eq.s32.totalorder %s34, 1
    %p514 = scmp.ne.s32.totalorder %s509, %s511
    %p515 = scmp.eq.s32.totalorder %s34, 0
    %p516 = por %p514, %p515
    %p517 = scmp.ne.s32.totalorder %s509, %s511
    %p518 = scmp.eq.s32.totalorder %s39, 1
    %p519 = por %p517, %p518
    %p520 = scmp.ne.s32.totalorder %s511, %s512
    %p521 = scmp.eq.s32.totalorder %s39, 0
    %p522 = por %p520, %p521
    %p523 = scmp.ne.s32.totalorder %s511, %s512
    %p524 = scmp.eq.s32.totalorder %s40, 1
    %p525 = por %p523, %p524
    %p527 = scmp.ne.s32.totalorder %s512, %s526
    %p528 = scmp.eq.s32.totalorder %s40, 0
    %p529 = por %p527, %p528
    %s531 = sadd.s32 %s530, 1
    %p534 = scmp.eq.s32.totalorder %s34, 1
    %p535 = scmp.ne.s32.totalorder %s530, %s532
    %p536 = scmp.eq.s32.totalorder %s34, 0
    %p537 = por %p535, %p536
    %p538 = scmp.ne.s32.totalorder %s530, %s532
    %p539 = scmp.eq.s32.totalorder %s39, 1
    %p540 = por %p538, %p539
    %p541 = scmp.ne.s32.totalorder %s532, %s533
    %p542 = scmp.eq.s32.totalorder %s39, 0
    %p543 = por %p541, %p542
    %p544 = scmp.ne.s32.totalorder %s532, %s533
    %p545 = scmp.eq.s32.totalorder %s40, 1
    %p546 = por %p544, %p545
    %p548 = scmp.ne.s32.totalorder %s533, %s547
    %p549 = scmp.eq.s32.totalorder %s40, 0
    %p550 = por %p548, %p549
    %s552 = sadd.s32 %s551, 1
    %p555 = scmp.eq.s32.totalorder %s34, 1
    %p556 = scmp.ne.s32.totalorder %s551, %s553
    %p557 = scmp.eq.s32.totalorder %s34, 0
    %p558 = por %p556, %p557
    %p559 = scmp.ne.s32.totalorder %s551, %s553
    %p560 = scmp.eq.s32.totalorder %s39, 1
    %p561 = por %p559, %p560
    %p562 = scmp.ne.s32.totalorder %s553, %s554
    %p563 = scmp.eq.s32.totalorder %s39, 0
    %p564 = por %p562, %p563
    %p565 = scmp.ne.s32.totalorder %s553, %s554
    %p566 = scmp.eq.s32.totalorder %s40, 1
    %p567 = por %p565, %p566
    %p569 = scmp.ne.s32.totalorder %s554, %s568
    %p570 = scmp.eq.s32.totalorder %s40, 0
    %p571 = por %p569, %p570
    %s573 = sadd.s32 %s572, 1
    %p576 = scmp.eq.s32.totalorder %s34, 1
    %p577 = scmp.ne.s32.totalorder %s572, %s574
    %p578 = scmp.eq.s32.totalorder %s34, 0
    %p579 = por %p577, %p578
    %p580 = scmp.ne.s32.totalorder %s572, %s574
    %p581 = scmp.eq.s32.totalorder %s39, 1
    %p582 = por %p580, %p581
    %p583 = scmp.ne.s32.totalorder %s574, %s575
    %p584 = scmp.eq.s32.totalorder %s39, 0
    %p585 = por %p583, %p584
    %p586 = scmp.ne.s32.totalorder %s574, %s575
    %p587 = scmp.eq.s32.totalorder %s40, 1
    %p588 = por %p586, %p587
    %p590 = scmp.ne.s32.totalorder %s575, %s589
    %p591 = scmp.eq.s32.totalorder %s40, 0
    %p592 = por %p590, %p591
    %s594 = sadd.s32 %s593, 1
    %p597 = scmp.eq.s32.totalorder %s34, 1
    %p598 = scmp.ne.s32.totalorder %s593, %s595
    %p599 = scmp.eq.s32.totalorder %s34, 0
    %p600 = por %p598, %p599
    %p601 = scmp.ne.s32.totalorder %s593, %s595
    %p602 = scmp.eq.s32.totalorder %s39, 1
    %p603 = por %p601, %p602
    %p604 = scmp.ne.s32.totalorder %s595, %s596
    %p605 = scmp.eq.s32.totalorder %s39, 0
    %p606 = por %p604, %p605
    %p607 = scmp.ne.s32.totalorder %s595, %s596
    %p608 = scmp.eq.s32.totalorder %s40, 1
    %p609 = por %p607, %p608
    %p611 = scmp.ne.s32.totalorder %s596, %s610
    %p612 = scmp.eq.s32.totalorder %s40, 0
    %p613 = por %p611, %p612
    %s615 = sadd.s32 %s614, 1
    %p618 = scmp.eq.s32.totalorder %s34, 1
    %p619 = scmp.ne.s32.totalorder %s614, %s616
    %p620 = scmp.eq.s32.totalorder %s34, 0
    %p621 = por %p619, %p620
    %p622 = scmp.ne.s32.totalorder %s614, %s616
    %p623 = scmp.eq.s32.totalorder %s39, 1
    %p624 = por %p622, %p623
    %p625 = scmp.ne.s32.totalorder %s616, %s617
    %p626 = scmp.eq.s32.totalorder %s39, 0
    %p627 = por %p625, %p626
    %p628 = scmp.ne.s32.totalorder %s616, %s617
    %p629 = scmp.eq.s32.totalorder %s40, 1
    %p630 = por %p628, %p629
    %p632 = scmp.ne.s32.totalorder %s617, %s631
    %p633 = scmp.eq.s32.totalorder %s40, 0
    %p634 = por %p632, %p633
    %s635 = ssub.s32 %s34, %s41
    %p636 = scmp.eq.s32.totalorder %s635, 0
    %s638 = sadd.s32 %s637, 1
    %s639 = scalar_select %p636, %s637, %s638
    %p642 = pneg %p636
    %p643 = scmp.eq.s32.totalorder %s34, 1
    %p644 = por %p642, %p643
    %p645 = scmp.ne.s32.totalorder %s637, %s640
    %p646 = scmp.eq.s32.totalorder %s34, 0
    %p647 = por %p645, %p646
    %p648 = scmp.ne.s32.totalorder %s637, %s640
    %p649 = scmp.eq.s32.totalorder %s39, 1
    %p650 = por %p648, %p649
    %p651 = scmp.ne.s32.totalorder %s640, %s641
    %p652 = scmp.eq.s32.totalorder %s39, 0
    %p653 = por %p651, %p652
    %p654 = scmp.ne.s32.totalorder %s640, %s641
    %p655 = scmp.eq.s32.totalorder %s40, 1
    %p656 = por %p654, %p655
    %p658 = scmp.ne.s32.totalorder %s641, %s657
    %p659 = scmp.eq.s32.totalorder %s40, 0
    %p660 = por %p658, %p659
    %p661 = scmp.le.s32.totalorder 1, %s34
    %p662 = scmp.lt.s32.totalorder %s34, 3
    %p663 = pnand %p661, %p662
    %p664 = pneg %p663
    // Predicated region
    $region9: #{sam_vit_forward.1} parent=5 // pred_check
      _
    $region10: #{sam_vit_forward.1} parent=5 // pred_check_branch
      %666 = sbr.rel (%p663) target = $region12
    $region11: #{sam_vit_forward.1} parent=5 // pred_region
      %s667 = ssub.s32 %s34, 1
      // Predicated region
      $region13: #{sam_vit_forward.1} parent=11 // pred_check
        %p668 = pneg %p81
      $region14: #{sam_vit_forward.1} parent=11 // pred_check_branch
        %670 = sbr.rel (%p668) target = $region16
      $region15: #{sam_vit_forward.1} parent=11 // pred_region
        _
      $region16: #{sam_vit_forward.1} parent=11 // pred_fallthru
        _
      // Predicated region
      $region17: #{sam_vit_forward.1} parent=11 // pred_check
        %p671 = pneg %p102
      $region18: #{sam_vit_forward.1} parent=11 // pred_check_branch
        %673 = sbr.rel (%p671) target = $region20
      $region19: #{sam_vit_forward.1} parent=11 // pred_region
        _
      $region20: #{sam_vit_forward.1} parent=11 // pred_fallthru
        _
      // Predicated region
      $region21: #{sam_vit_forward.1} parent=11 // pred_check
        %p674 = pneg %p123
      $region22: #{sam_vit_forward.1} parent=11 // pred_check_branch
        %676 = sbr.rel (%p674) target = $region24
      $region23: #{sam_vit_forward.1} parent=11 // pred_region
        _
      $region24: #{sam_vit_forward.1} parent=11 // pred_fallthru
        _
      // Predicated region
      $region25: #{sam_vit_forward.1} parent=11 // pred_check
        %p677 = pneg %p144
      $region26: #{sam_vit_forward.1} parent=11 // pred_check_branch
        %679 = sbr.rel (%p677) target = $region28
      $region27: #{sam_vit_forward.1} parent=11 // pred_region
        _
      $region28: #{sam_vit_forward.1} parent=11 // pred_fallthru
        _
      // Predicated region
      $region29: #{sam_vit_forward.1} parent=11 // pred_check
        %p680 = pneg %p165
      $region30: #{sam_vit_forward.1} parent=11 // pred_check_branch
        %682 = sbr.rel (%p680) target = $region32
      $region31: #{sam_vit_forward.1} parent=11 // pred_region
        _
      $region32: #{sam_vit_forward.1} parent=11 // pred_fallthru
        _
      // Predicated region
      $region33: #{sam_vit_forward.1} parent=11 // pred_check
        %p683 = pneg %p186
      $region34: #{sam_vit_forward.1} parent=11 // pred_check_branch
        %685 = sbr.rel (%p683) target = $region36
      $region35: #{sam_vit_forward.1} parent=11 // pred_region
        _
      $region36: #{sam_vit_forward.1} parent=11 // pred_fallthru
        _
      // Predicated region
      $region37: #{sam_vit_forward.1} parent=11 // pred_check
        %p686 = pneg %p207
      $region38: #{sam_vit_forward.1} parent=11 // pred_check_branch
        %688 = sbr.rel (%p686) target = $region40
      $region39: #{sam_vit_forward.1} parent=11 // pred_region
        _
      $region40: #{sam_vit_forward.1} parent=11 // pred_fallthru
        _
      // Predicated region
      $region41: #{sam_vit_forward.1} parent=11 // pred_check
        %p689 = pneg %p228
      $region42: #{sam_vit_forward.1} parent=11 // pred_check_branch
        %691 = sbr.rel (%p689) target = $region44
      $region43: #{sam_vit_forward.1} parent=11 // pred_region
        _
      $region44: #{sam_vit_forward.1} parent=11 // pred_fallthru
        _
      // Predicated region
      $region45: #{sam_vit_forward.1} parent=11 // pred_check
        %p692 = pneg %p249
      $region46: #{sam_vit_forward.1} parent=11 // pred_check_branch
        %694 = sbr.rel (%p692) target = $region48
      $region47: #{sam_vit_forward.1} parent=11 // pred_region
        _
      $region48: #{sam_vit_forward.1} parent=11 // pred_fallthru
        _
      // Predicated region
      $region49: #{sam_vit_forward.1} parent=11 // pred_check
        %p695 = pneg %p270
      $region50: #{sam_vit_forward.1} parent=11 // pred_check_branch
        %697 = sbr.rel (%p695) target = $region52
      $region51: #{sam_vit_forward.1} parent=11 // pred_region
        _
      $region52: #{sam_vit_forward.1} parent=11 // pred_fallthru
        _
      // Predicated region
      $region53: #{sam_vit_forward.1} parent=11 // pred_check
        %p698 = pneg %p291
      $region54: #{sam_vit_forward.1} parent=11 // pred_check_branch
        %700 = sbr.rel (%p698) target = $region56
      $region55: #{sam_vit_forward.1} parent=11 // pred_region
        _
      $region56: #{sam_vit_forward.1} parent=11 // pred_fallthru
        _
      // Predicated region
      $region57: #{sam_vit_forward.1} parent=11 // pred_check
        %p701 = pneg %p312
      $region58: #{sam_vit_forward.1} parent=11 // pred_check_branch
        %703 = sbr.rel (%p701) target = $region60
      $region59: #{sam_vit_forward.1} parent=11 // pred_region
        _
      $region60: #{sam_vit_forward.1} parent=11 // pred_fallthru
        _
      // Predicated region
      $region61: #{sam_vit_forward.1} parent=11 // pred_check
        %p704 = pneg %p333
      $region62: #{sam_vit_forward.1} parent=11 // pred_check_branch
        %706 = sbr.rel (%p704) target = $region64
      $region63: #{sam_vit_forward.1} parent=11 // pred_region
        _
      $region64: #{sam_vit_forward.1} parent=11 // pred_fallthru
        _
      // Predicated region
      $region65: #{sam_vit_forward.1} parent=11 // pred_check
        %p707 = pneg %p354
      $region66: #{sam_vit_forward.1} parent=11 // pred_check_branch
        %709 = sbr.rel (%p707) target = $region68
      $region67: #{sam_vit_forward.1} parent=11 // pred_region
        _
      $region68: #{sam_vit_forward.1} parent=11 // pred_fallthru
        _
      // Predicated region
      $region69: #{sam_vit_forward.1} parent=11 // pred_check
        %p710 = pneg %p375
      $region70: #{sam_vit_forward.1} parent=11 // pred_check_branch
        %712 = sbr.rel (%p710) target = $region72
      $region71: #{sam_vit_forward.1} parent=11 // pred_region
        _
      $region72: #{sam_vit_forward.1} parent=11 // pred_fallthru
        _
      // Predicated region
      $region73: #{sam_vit_forward.1} parent=11 // pred_check
        %p713 = pneg %p396
      $region74: #{sam_vit_forward.1} parent=11 // pred_check_branch
        %715 = sbr.rel (%p713) target = $region76
      $region75: #{sam_vit_forward.1} parent=11 // pred_region
        _
      $region76: #{sam_vit_forward.1} parent=11 // pred_fallthru
        _
      // Predicated region
      $region77: #{sam_vit_forward.1} parent=11 // pred_check
        %p716 = pneg %p417
      $region78: #{sam_vit_forward.1} parent=11 // pred_check_branch
        %718 = sbr.rel (%p716) target = $region80
      $region79: #{sam_vit_forward.1} parent=11 // pred_region
        _
      $region80: #{sam_vit_forward.1} parent=11 // pred_fallthru
        _
      // Predicated region
      $region81: #{sam_vit_forward.1} parent=11 // pred_check
        %p719 = pneg %p438
      $region82: #{sam_vit_forward.1} parent=11 // pred_check_branch
        %721 = sbr.rel (%p719) target = $region84
      $region83: #{sam_vit_forward.1} parent=11 // pred_region
        _
      $region84: #{sam_vit_forward.1} parent=11 // pred_fallthru
        _
      // Predicated region
      $region85: #{sam_vit_forward.1} parent=11 // pred_check
        %p722 = pneg %p459
      $region86: #{sam_vit_forward.1} parent=11 // pred_check_branch
        %724 = sbr.rel (%p722) target = $region88
      $region87: #{sam_vit_forward.1} parent=11 // pred_region
        _
      $region88: #{sam_vit_forward.1} parent=11 // pred_fallthru
        _
      // Predicated region
      $region89: #{sam_vit_forward.1} parent=11 // pred_check
        %p725 = pneg %p480
      $region90: #{sam_vit_forward.1} parent=11 // pred_check_branch
        %727 = sbr.rel (%p725) target = $region92
      $region91: #{sam_vit_forward.1} parent=11 // pred_region
        _
      $region92: #{sam_vit_forward.1} parent=11 // pred_fallthru
        _
      // Predicated region
      $region93: #{sam_vit_forward.1} parent=11 // pred_check
        %p728 = pneg %p501
      $region94: #{sam_vit_forward.1} parent=11 // pred_check_branch
        %730 = sbr.rel (%p728) target = $region96
      $region95: #{sam_vit_forward.1} parent=11 // pred_region
        _
      $region96: #{sam_vit_forward.1} parent=11 // pred_fallthru
        _
      // Predicated region
      $region97: #{sam_vit_forward.1} parent=11 // pred_check
        %p731 = pneg %p522
      $region98: #{sam_vit_forward.1} parent=11 // pred_check_branch
        %733 = sbr.rel (%p731) target = $region100
      $region99: #{sam_vit_forward.1} parent=11 // pred_region
        _
      $region100: #{sam_vit_forward.1} parent=11 // pred_fallthru
        _
      // Predicated region
      $region101: #{sam_vit_forward.1} parent=11 // pred_check
        %p734 = pneg %p543
      $region102: #{sam_vit_forward.1} parent=11 // pred_check_branch
        %736 = sbr.rel (%p734) target = $region104
      $region103: #{sam_vit_forward.1} parent=11 // pred_region
        _
      $region104: #{sam_vit_forward.1} parent=11 // pred_fallthru
        _
      // Predicated region
      $region105: #{sam_vit_forward.1} parent=11 // pred_check
        %p737 = pneg %p564
      $region106: #{sam_vit_forward.1} parent=11 // pred_check_branch
        %739 = sbr.rel (%p737) target = $region108
      $region107: #{sam_vit_forward.1} parent=11 // pred_region
        _
      $region108: #{sam_vit_forward.1} parent=11 // pred_fallthru
        _
      // Predicated region
      $region109: #{sam_vit_forward.1} parent=11 // pred_check
        %p740 = pneg %p585
      $region110: #{sam_vit_forward.1} parent=11 // pred_check_branch
        %742 = sbr.rel (%p740) target = $region112
      $region111: #{sam_vit_forward.1} parent=11 // pred_region
        _
      $region112: #{sam_vit_forward.1} parent=11 // pred_fallthru
        _
      // Predicated region
      $region113: #{sam_vit_forward.1} parent=11 // pred_check
        %p743 = pneg %p606
      $region114: #{sam_vit_forward.1} parent=11 // pred_check_branch
        %745 = sbr.rel (%p743) target = $region116
      $region115: #{sam_vit_forward.1} parent=11 // pred_region
        _
      $region116: #{sam_vit_forward.1} parent=11 // pred_fallthru
        _
      // Predicated region
      $region117: #{sam_vit_forward.1} parent=11 // pred_check
        %p746 = pneg %p627
      $region118: #{sam_vit_forward.1} parent=11 // pred_check_branch
        %748 = sbr.rel (%p746) target = $region120
      $region119: #{sam_vit_forward.1} parent=11 // pred_region
        _
      $region120: #{sam_vit_forward.1} parent=11 // pred_fallthru
        _
    $region12: #{sam_vit_forward.1} parent=5 // pred_fallthru
      _
    %p749 = scmp.lt.s32.totalorder %s34, 2
    // Predicated region
    $region121: #{sam_vit_forward.1} parent=5 // pred_check
      %p750 = pneg %p749
    $region122: #{sam_vit_forward.1} parent=5 // pred_check_branch
      %752 = sbr.rel (%p750) target = $region124
    $region123: #{sam_vit_forward.1} parent=5 // pred_region
      // Predicated region
      $region125: #{sam_vit_forward.1} parent=123 // pred_check
        %p753 = pneg %p54
      $region126: #{sam_vit_forward.1} parent=123 // pred_check_branch
        %755 = sbr.rel (%p753) target = $region128
      $region127: #{sam_vit_forward.1} parent=123 // pred_region
        %s756 = smul.u32 2, %s34
        %p757 = scmp.lt.s32.totalorder %s756, 3
        %s758 = scalar_select %p757, %s756, 3
        %s759 = smul.addr %s758, 2
        %s760 = smul.addr %s759, 8
        %s761 = scalar_lea.vmem %s0, %s760
        %s762 = smul.u32 2, %s34
      $region128: #{sam_vit_forward.1} parent=123 // pred_fallthru
        _
    $region124: #{sam_vit_forward.1} parent=5 // pred_fallthru
      _
    %p763 = scmp.le.s32.totalorder 1, %s34
    %p764 = scmp.lt.s32.totalorder %s34, 3
    %p765 = pnand %p763, %p764
    %p766 = pneg %p765
    // Predicated region
    $region129: #{sam_vit_forward.1} parent=5 // pred_check
      _
    $region130: #{sam_vit_forward.1} parent=5 // pred_check_branch
      %768 = sbr.rel (%p765) target = $region132
    $region131: #{sam_vit_forward.1} parent=5 // pred_region
      %s769 = ssub.s32 %s34, 1
      %s770 = smul.u32 2, %s39
      %p771 = scmp.lt.s32.totalorder %s770, 3
      %s772 = scalar_select %p771, %s770, 3
      %s773 = smul.addr %s772, 2
      %s774 = smul.addr %s773, 8
      %s775 = scalar_lea.vmem %s0, %s774
      %p776 = pneg %p60
      %p777 = pneg %p57
      %p778 = pneg %p81
      %p779 = pneg %p78
      %p780 = pneg %p102
      %p781 = pneg %p99
      %p782 = pneg %p123
      %p783 = pneg %p120
      %p784 = pneg %p144
      %p785 = pneg %p141
      %p786 = pneg %p165
      %p787 = pneg %p162
      %p788 = pneg %p186
      %p789 = pneg %p183
      %p790 = pneg %p207
      %p791 = pneg %p204
      %p792 = pneg %p228
      %p793 = pneg %p225
      %p794 = pneg %p249
      %p795 = pneg %p246
      %p796 = pneg %p270
      %p797 = pneg %p267
      %p798 = pneg %p291
      %p799 = pneg %p288
      %p800 = pneg %p312
      %p801 = pneg %p309
      %p802 = pneg %p333
      %p803 = pneg %p330
      %p804 = pneg %p354
      %p805 = pneg %p351
      %p806 = pneg %p375
      %p807 = pneg %p372
      %p808 = pneg %p396
      %p809 = pneg %p393
      %p810 = pneg %p417
      %p811 = pneg %p414
      %p812 = pneg %p438
      %p813 = pneg %p435
      %p814 = pneg %p459
      %p815 = pneg %p456
      %p816 = pneg %p480
      %p817 = pneg %p477
      %p818 = pneg %p501
      %p819 = pneg %p498
      %p820 = pneg %p522
      %p821 = pneg %p519
      %p822 = pneg %p543
      %p823 = pneg %p540
      %p824 = pneg %p564
      %p825 = pneg %p561
      %p826 = pneg %p585
      %p827 = pneg %p582
      %p828 = pneg %p606
      %p829 = pneg %p603
      %p830 = pneg %p627
      %p831 = pneg %p624
      %p832 = pneg %p653
      %p833 = pneg %p650
      %s834 = smul.u32 2, %s39
      %p835 = scmp.lt.s32.totalorder %s834, 3
      %s836 = scalar_select %p835, %s834, 3
      %s837 = smul.addr %s836, 4
      %s838 = smul.addr %s837, 8
      %s839 = scalar_lea.vmem %s28, %s838
      %s840 = smul.u32 2, %s39
      %p841 = scmp.lt.s32.totalorder %s840, 3
      %s842 = scalar_select %p841, %s840, 3
      %s843 = smul.addr %s842, 2
      %s844 = smul.addr %s843, 8
      %s845 = scalar_lea.vmem %s0, %s844
      %s846 = smul.u32 2, %s39
      %s847 = smul.u32 2, %s39
      %p848 = scmp.lt.s32.totalorder %s847, 3
      %s849 = scalar_select %p848, %s847, 3
      %s850 = smul.addr %s849, 4
      %s851 = smul.addr %s850, 8
      %s852 = scalar_lea.vmem %s28, %s851
      %s853 = smul.u32 2, %s39
      %v854 = vld [vmem:[%s845] sm:$0xff]
      %v855 = vld [vmem:[%s845 + $0x8] sm:$0xff]
      %v856 = vld [vmem:[%s845 + $0x10] sm:$0xff]
      %v857 = vld [vmem:[%s845 + $0x18] sm:$0xff]
      %v858 = vld [vmem:[%s1] sm:$0xff]
      %v859 = vld [vmem:[%s1 + $0x8] sm:$0xff]
      %v860 = vld [vmem:[%s1 + $0x10] sm:$0xff]
      %v861 = vld [vmem:[%s1 + $0x18] sm:$0xff]
      %v862 = vld [vmem:[%s1 + $0x20] sm:$0xff]
      %v863 = vld [vmem:[%s1 + $0x28] sm:$0xff]
      %v864 = vld [vmem:[%s1 + $0x30] sm:$0xff]
      %v865 = vld [vmem:[%s1 + $0x38] sm:$0xff]
      %v866 = vld [vmem:[%s1 + $0x40] sm:$0xff]
      %v867 = vld [vmem:[%s1 + $0x48] sm:$0xff]
      %v868 = vld [vmem:[%s1 + $0x50] sm:$0xff]
      %v869 = vld [vmem:[%s1 + $0x58] sm:$0xff]
      %v870 = vld [vmem:[%s1 + $0x60] sm:$0xff]
      %v871 = vld [vmem:[%s1 + $0x68] sm:$0xff]
      %v872 = vld [vmem:[%s1 + $0x70] sm:$0xff]
      %v873 = vld [vmem:[%s1 + $0x78] sm:$0xff]
      %v874 = vld [vmem:[%s1 + $0x80] sm:$0xff]
      %v875 = vld [vmem:[%s1 + $0x88] sm:$0xff]
      %v876 = vld [vmem:[%s1 + $0x90] sm:$0xff]
      %v877 = vld [vmem:[%s1 + $0x98] sm:$0xff]
      %v878 = vld [vmem:[%s1 + $0xa0] sm:$0xff]
      %v879 = vld [vmem:[%s1 + $0xa8] sm:$0xff]
      %v880 = vld [vmem:[%s1 + $0xb0] sm:$0xff]
      %v881 = vld [vmem:[%s1 + $0xb8] sm:$0xff]
      %v882 = vld [vmem:[%s2] sm:$0x1]
      %v884 = vperm.slane %v882, 0
      %vm886 = vcmask 523264
      %v888 = vsel %vm886, %v855, 0
      %v891 = vsel %vm886, %v857, 0
      %893 = vmatpush.msra.mxu0 %v873
      %894 = vmatpush.msra.mxu0 %v872
      %895 = vmatpush.msra.mxu0 %v871
      %896 = vmatpush.msra.mxu0 %v870
      %897 = vmatpush.msra.mxu0 %v869
      %898 = vmatpush.msra.mxu0 %v868
      %899 = vmatpush.msra.mxu0 %v867
      %900 = vmatpush.msra.mxu0 %v866
      %901 = vmatpush.msra.mxu0 %v865
      %902 = vmatpush.msra.mxu0 %v864
      %903 = vmatpush.msra.mxu0 %v863
      %904 = vmatpush.msra.mxu0 %v862
      %905 = vmatpush.msra.mxu0 %v861
      %906 = vmatpush.msra.mxu0 %v860
      %907 = vmatpush.msra.mxu0 %v859
      %908 = vmatpush.msra.mxu0 %v858
      %909 = vmatmul.f32.gmra.mxu0 %v854
      %v910 = vpop.f32.mrf.mxu0
      %v911 = vadd.f32 %v884, %v910
      %912 = vmatmul.f32.gmra.mxu0 %v856
      %v913 = vpop.f32.mrf.mxu0
      %v914 = vadd.f32 %v884, %v913
      %915 = vdwg.mxu0
      %916 = vmatpush.msra.mxu0 0.0
      %917 = vmatpush.msra.mxu0 0.0
      %918 = vmatpush.msra.mxu0 0.0
      %919 = vmatpush.msra.mxu0 0.0
      %920 = vmatpush.msra.mxu0 0.0
      %921 = vmatpush.msra.mxu0 0.0
      %922 = vmatpush.msra.mxu0 0.0
      %923 = vmatpush.msra.mxu0 0.0
      %924 = vmatpush.msra.mxu0 %v881
      %925 = vmatpush.msra.mxu0 %v880
      %926 = vmatpush.msra.mxu0 %v879
      %927 = vmatpush.msra.mxu0 %v878
      %928 = vmatpush.msra.mxu0 %v877
      %929 = vmatpush.msra.mxu0 %v876
      %930 = vmatpush.msra.mxu0 %v875
      %931 = vmatpush.msra.mxu0 %v874
      %932 = vmatmul.f32.gmra.mxu0 %v888
      %v933 = vpop.f32.mrf.mxu0
      %v934 = vadd.f32 %v911, %v933
      %935 = vmatmul.f32.gmra.mxu0 %v891
      %v936 = vpop.f32.mrf.mxu0
      %v937 = vadd.f32 %v914, %v936
      %938 = vdwg.mxu0
      %v939 = vld [vmem:[%s3] sm:$0xff]
      %v940 = vld [vmem:[%s3 + $0x8] sm:$0xff]
      %v941 = vadd.f32 %v934, %v939
      %v942 = vadd.f32 %v937, %v940
      %v943 = vld [vmem:[%s4] sm:$0x1]
      %v944 = vld [vmem:[%s5] sm:$0x1]
      %v945 = vsel %vm886, %v941, 0.0
      %946 = vadd.xlane.f32.xlu0 %v945
      %v947 = vpop.xlane.xlu0 %946
      %v948 = vsel %vm886, %v942, 0.0
      %949 = vadd.xlane.f32.xlu0 %v948
      %v950 = vpop.xlane.xlu0 %949
      %v951 = vrcp.pop 64.0
      %v952 = vmul.f32 64.0, %v951
      %v953 = vsub.f32 1.0, %v952
      %v954 = vmul.f32 %v951, %v953
      %v955 = vadd.f32 %v951, %v954
      %vm956 = vweird.f32 %v951
      %v957 = vsel %vm956, %v951, %v955
      %v958 = vmul.f32 %v947, %v957
      %v959 = vmul.f32 %v950, %v957
      %v960 = vsub.f32 %v941, %v958
      %v961 = vsub.f32 %v942, %v959
      %v962 = vmul.f32 %v960, %v960
      %v963 = vmul.f32 %v961, %v961
      %v964 = vsel %vm886, %v962, 0.0
      %965 = vadd.xlane.f32.xlu0 %v964
      %v966 = vpop.xlane.xlu0 %965
      %v967 = vsel %vm886, %v963, 0.0
      %968 = vadd.xlane.f32.xlu0 %v967
      %v969 = vpop.xlane.xlu0 %968
      %v970 = vmul.f32 %v966, %v957
      %v971 = vmul.f32 %v969, %v957
      %v972 = vadd.f32 %v970, 1e-06
      %v973 = vadd.f32 %v971, 1e-06
      %v974 = vrsqrt.pop %v972
      %v975 = vmul.f32 %v974, %v972
      %v976 = vmul.f32 %v975, %v974
      %v977 = vmul.f32 0.5, %v976
      %v978 = vsub.f32 1.5, %v977
      %v979 = vmul.f32 %v974, %v978
      %vm980 = vweird.f32 %v972
      %vm981 = vweird.f32 %v974
      %vm982 = vmor %vm980, %vm981
      %v983 = vsel %vm982, %v974, %v979
      %v984 = vrsqrt.pop %v973
      %v985 = vmul.f32 %v984, %v973
      %v986 = vmul.f32 %v985, %v984
      %v987 = vmul.f32 0.5, %v986
      %v988 = vsub.f32 1.5, %v987
      %v989 = vmul.f32 %v984, %v988
      %vm990 = vweird.f32 %v973
      %vm991 = vweird.f32 %v984
      %vm992 = vmor %vm990, %vm991
      %v993 = vsel %vm992, %v984, %v989
      %v994 = vmul.f32 %v960, %v983
      %v995 = vmul.f32 %v961, %v993
      %v997 = vperm.slane %v943, 0
      %v999 = vmul.f32 %v994, %v997
      %v1000 = vmul.f32 %v995, %v997
      %v1002 = vperm.slane %v944, 0
      %v1004 = vadd.f32 %v999, %v1002
      %v1005 = vadd.f32 %v1000, %v1002
      %v1006 = vld [vmem:[%s6] sm:$0xff]
      %v1007 = vld [vmem:[%s6 + $0x8] sm:$0xff]
      %v1008 = vld [vmem:[%s6 + $0x10] sm:$0xff]
      %v1009 = vld [vmem:[%s6 + $0x18] sm:$0xff]
      %v1010 = vld [vmem:[%s6 + $0x20] sm:$0xff]
      %v1011 = vld [vmem:[%s6 + $0x28] sm:$0xff]
      %v1012 = vld [vmem:[%s6 + $0x30] sm:$0xff]
      %v1013 = vld [vmem:[%s6 + $0x38] sm:$0xff]
      %v1014 = vld [vmem:[%s7] sm:$0x1]
      %v1016 = vperm.slane %v1014, 0
      %v1019 = vsel %vm886, %v1004, 0
      %v1022 = vsel %vm886, %v1005, 0
      %1024 = vmatpush.msra.mxu0 0.0
      %1025 = vmatpush.msra.mxu0 0.0
      %1026 = vmatpush.msra.mxu0 0.0
      %1027 = vmatpush.msra.mxu0 0.0
      %1028 = vmatpush.msra.mxu0 0.0
      %1029 = vmatpush.msra.mxu0 0.0
      %1030 = vmatpush.msra.mxu0 0.0
      %1031 = vmatpush.msra.mxu0 0.0
      %1032 = vmatpush.msra.mxu0 %v1013
      %1033 = vmatpush.msra.mxu0 %v1012
      %1034 = vmatpush.msra.mxu0 %v1011
      %1035 = vmatpush.msra.mxu0 %v1010
      %1036 = vmatpush.msra.mxu0 %v1009
      %1037 = vmatpush.msra.mxu0 %v1008
      %1038 = vmatpush.msra.mxu0 %v1007
      %1039 = vmatpush.msra.mxu0 %v1006
      %1040 = vmatmul.f32.gmra.mxu0 %v1019
      %v1041 = vpop.f32.mrf.mxu0
      %v1042 = vadd.f32 %v1016, %v1041
      %1043 = vmatmul.f32.gmra.mxu0 %v1022
      %v1044 = vpop.f32.mrf.mxu0
      %v1045 = vadd.f32 %v1016, %v1044
      %1046 = vdwg.mxu0
      %v1047 = vld [vmem:[%s8] sm:$0xff]
      %v1048 = vld [vmem:[%s8 + $0x8] sm:$0xff]
      %v1049 = vld [vmem:[%s8 + $0x10] sm:$0xff]
      %v1050 = vld [vmem:[%s8 + $0x18] sm:$0xff]
      %v1051 = vld [vmem:[%s8 + $0x20] sm:$0xff]
      %v1052 = vld [vmem:[%s8 + $0x28] sm:$0xff]
      %v1053 = vld [vmem:[%s8 + $0x30] sm:$0xff]
      %v1054 = vld [vmem:[%s8 + $0x38] sm:$0xff]
      %v1055 = vld [vmem:[%s9] sm:$0x1]
      %v1057 = vperm.slane %v1055, 0
      %1059 = vmatpush.msra.mxu0 0.0
      %1060 = vmatpush.msra.mxu0 0.0
      %1061 = vmatpush.msra.mxu0 0.0
      %1062 = vmatpush.msra.mxu0 0.0
      %1063 = vmatpush.msra.mxu0 0.0
      %1064 = vmatpush.msra.mxu0 0.0
      %1065 = vmatpush.msra.mxu0 0.0
      %1066 = vmatpush.msra.mxu0 0.0
      %1067 = vmatpush.msra.mxu0 %v1054
      %1068 = vmatpush.msra.mxu0 %v1053
      %1069 = vmatpush.msra.mxu0 %v1052
      %1070 = vmatpush.msra.mxu0 %v1051
      %1071 = vmatpush.msra.mxu0 %v1050
      %1072 = vmatpush.msra.mxu0 %v1049
      %1073 = vmatpush.msra.mxu0 %v1048
      %1074 = vmatpush.msra.mxu0 %v1047
      %1075 = vmatmul.f32.gmra.mxu0 %v1019
      %v1076 = vpop.f32.mrf.mxu0
      %v1077 = vadd.f32 %v1057, %v1076
      %1078 = vmatmul.f32.gmra.mxu0 %v1022
      %v1079 = vpop.f32.mrf.mxu0
      %v1080 = vadd.f32 %v1057, %v1079
      %1081 = vdwg.mxu0
      %v1082 = vld [vmem:[%s10] sm:$0xff]
      %v1083 = vld [vmem:[%s10 + $0x8] sm:$0xff]
      %v1084 = vld [vmem:[%s10 + $0x10] sm:$0xff]
      %v1085 = vld [vmem:[%s10 + $0x18] sm:$0xff]
      %v1086 = vld [vmem:[%s10 + $0x20] sm:$0xff]
      %v1087 = vld [vmem:[%s10 + $0x28] sm:$0xff]
      %v1088 = vld [vmem:[%s10 + $0x30] sm:$0xff]
      %v1089 = vld [vmem:[%s10 + $0x38] sm:$0xff]
      %v1090 = vld [vmem:[%s11] sm:$0x1]
      %v1092 = vperm.slane %v1090, 0
      %1094 = vmatpush.msra.mxu0 0.0
      %1095 = vmatpush.msra.mxu0 0.0
      %1096 = vmatpush.msra.mxu0 0.0
      %1097 = vmatpush.msra.mxu0 0.0
      %1098 = vmatpush.msra.mxu0 0.0
      %1099 = vmatpush.msra.mxu0 0.0
      %1100 = vmatpush.msra.mxu0 0.0
      %1101 = vmatpush.msra.mxu0 0.0
      %1102 = vmatpush.msra.mxu0 %v1089
      %1103 = vmatpush.msra.mxu0 %v1088
      %1104 = vmatpush.msra.mxu0 %v1087
      %1105 = vmatpush.msra.mxu0 %v1086
      %1106 = vmatpush.msra.mxu0 %v1085
      %1107 = vmatpush.msra.mxu0 %v1084
      %1108 = vmatpush.msra.mxu0 %v1083
      %1109 = vmatpush.msra.mxu0 %v1082
      %1110 = vmatmul.f32.gmra.mxu0 %v1019
      %v1111 = vpop.f32.mrf.mxu0
      %v1112 = vadd.f32 %v1092, %v1111
      %1113 = vmatmul.f32.gmra.mxu0 %v1022
      %v1114 = vpop.f32.mrf.mxu0
      %v1115 = vadd.f32 %v1092, %v1114
      %1116 = vdwg.mxu0
      %vm1117 = vcmask 261120
      %v1119 = vsel %vm1117, %v1042, 0
      %v1122 = vsel %vm1117, %v1045, 0
      %v1125 = vsel %vm1117, %v1077, 0
      %v1128 = vsel %vm1117, %v1080, 0
      %1130 = vmatpush.xpose.msra.mxu0 0.0
      %1131 = vmatpush.xpose.msra.mxu0 0.0
      %1132 = vmatpush.xpose.msra.mxu0 0.0
      %1133 = vmatpush.xpose.msra.mxu0 0.0
      %1134 = vmatpush.xpose.msra.mxu0 0.0
      %1135 = vmatpush.xpose.msra.mxu0 0.0
      %1136 = vmatpush.xpose.msra.mxu0 0.0
      %1137 = vmatpush.xpose.msra.mxu0 0.0
      %1138 = vmatpush.xpose.msra.mxu0 0.0
      %1139 = vmatpush.xpose.msra.mxu0 0.0
      %1140 = vmatpush.xpose.msra.mxu0 0.0
      %1141 = vmatpush.xpose.msra.mxu0 0.0
      %1142 = vmatpush.xpose.msra.mxu0 0.0
      %1143 = vmatpush.xpose.msra.mxu0 0.0
      %1144 = vmatpush.xpose.msra.mxu0 %v1128
      %1145 = vmatpush.xpose.msra.mxu0 %v1125
      %1146 = vmatmul.f32.gmra.mxu0 %v1119
      %v1147 = vpop.f32.mrf.mxu0
      %v1148 = vadd.f32 0.0, %v1147
      %1149 = vmatmul.f32.gmra.mxu0 %v1122
      %v1150 = vpop.f32.mrf.mxu0
      %v1151 = vadd.f32 0.0, %v1150
      %1152 = vdwg.mxu0
      %v1153 = vmul.f32 %v1148, 0.17677669
      %v1154 = vmul.f32 %v1151, 0.17677669
      %vm1155 = vcmask 130048
      %v1156 = vsel %vm1155, %v1153, -inf
      %1157 = vmax.xlane.f32.xlu0 %v1156
      %v1158 = vpop.xlane.xlu0 %1157
      %v1159 = vsel %vm1155, %v1154, -inf
      %1160 = vmax.xlane.f32.xlu0 %v1159
      %v1161 = vpop.xlane.xlu0 %1160
      %v1162 = vsub.f32 %v1153, %v1158
      %v1163 = vsub.f32 %v1154, %v1161
      %v1164 = vmul.f32 %v1162, 1.442695
      %v1165 = vpow.pop %v1164
      %v1166 = vmul.f32 %v1163, 1.442695
      %v1167 = vpow.pop %v1166
      %v1168 = vsel %vm1155, %v1165, 0.0
      %1169 = vadd.xlane.f32.xlu0 %v1168
      %v1170 = vpop.xlane.xlu0 %1169
      %v1171 = vsel %vm1155, %v1167, 0.0
      %1172 = vadd.xlane.f32.xlu0 %v1171
      %v1173 = vpop.xlane.xlu0 %1172
      %v1174 = vrcp.pop %v1170
      %v1175 = vrcp.pop %v1173
      %v1176 = vmul.f32 %v1165, %v1174
      %v1177 = vmul.f32 %v1167, %v1175
      %v1179 = vsel %vm1155, %v1176, 0
      %v1182 = vsel %vm1155, %v1177, 0
      %1184 = vmatpush.msra.mxu0 0.0
      %1185 = vmatpush.msra.mxu0 0.0
      %1186 = vmatpush.msra.mxu0 0.0
      %1187 = vmatpush.msra.mxu0 0.0
      %1188 = vmatpush.msra.mxu0 0.0
      %1189 = vmatpush.msra.mxu0 0.0
      %1190 = vmatpush.msra.mxu0 0.0
      %1191 = vmatpush.msra.mxu0 0.0
      %1192 = vmatpush.msra.mxu0 0.0
      %1193 = vmatpush.msra.mxu0 0.0
      %1194 = vmatpush.msra.mxu0 0.0
      %1195 = vmatpush.msra.mxu0 0.0
      %1196 = vmatpush.msra.mxu0 0.0
      %1197 = vmatpush.msra.mxu0 0.0
      %1198 = vmatpush.msra.mxu0 %v1115
      %1199 = vmatpush.msra.mxu0 %v1112
      %1200 = vmatmul.f32.gmra.mxu0 %v1179
      %v1201 = vpop.f32.mrf.mxu0
      %v1202 = vadd.f32 0.0, %v1201
      %1203 = vmatmul.f32.gmra.mxu0 %v1182
      %v1204 = vpop.f32.mrf.mxu0
      %v1205 = vadd.f32 0.0, %v1204
      %1206 = vdwg.mxu0
      %v1207 = vld [vmem:[%s12] sm:$0xff]
      %v1208 = vld [vmem:[%s12 + $0x8] sm:$0xff]
      %v1209 = vld [vmem:[%s12 + $0x10] sm:$0xff]
      %v1210 = vld [vmem:[%s12 + $0x18] sm:$0xff]
      %s1211 = scalar_lea.vmem %s6, 64
      %v1212 = vld [vmem:[%s1211] sm:$0xff]
      %v1213 = vld [vmem:[%s1211 + $0x8] sm:$0xff]
      %v1214 = vld [vmem:[%s1211 + $0x10] sm:$0xff]
      %v1215 = vld [vmem:[%s1211 + $0x18] sm:$0xff]
      %v1216 = vld [vmem:[%s1211 + $0x20] sm:$0xff]
      %v1217 = vld [vmem:[%s1211 + $0x28] sm:$0xff]
      %v1218 = vld [vmem:[%s1211 + $0x30] sm:$0xff]
      %v1219 = vld [vmem:[%s1211 + $0x38] sm:$0xff]
      %s1220 = scalar_lea.vmem %s7, 1
      %v1221 = vld [vmem:[%s1220] sm:$0x1]
      %v1223 = vperm.slane %v1221, 0
      %1225 = vmatpush.msra.mxu0 0.0
      %1226 = vmatpush.msra.mxu0 0.0
      %1227 = vmatpush.msra.mxu0 0.0
      %1228 = vmatpush.msra.mxu0 0.0
      %1229 = vmatpush.msra.mxu0 0.0
      %1230 = vmatpush.msra.mxu0 0.0
      %1231 = vmatpush.msra.mxu0 0.0
      %1232 = vmatpush.msra.mxu0 0.0
      %1233 = vmatpush.msra.mxu0 %v1219
      %1234 = vmatpush.msra.mxu0 %v1218
      %1235 = vmatpush.msra.mxu0 %v1217
      %1236 = vmatpush.msra.mxu0 %v1216
      %1237 = vmatpush.msra.mxu0 %v1215
      %1238 = vmatpush.msra.mxu0 %v1214
      %1239 = vmatpush.msra.mxu0 %v1213
      %1240 = vmatpush.msra.mxu0 %v1212
      %1241 = vmatmul.f32.gmra.mxu0 %v1019
      %v1242 = vpop.f32.mrf.mxu0
      %v1243 = vadd.f32 %v1223, %v1242
      %1244 = vmatmul.f32.gmra.mxu0 %v1022
      %v1245 = vpop.f32.mrf.mxu0
      %v1246 = vadd.f32 %v1223, %v1245
      %1247 = vdwg.mxu0
      %s1248 = scalar_lea.vmem %s8, 64
      %v1249 = vld [vmem:[%s1248] sm:$0xff]
      %v1250 = vld [vmem:[%s1248 + $0x8] sm:$0xff]
      %v1251 = vld [vmem:[%s1248 + $0x10] sm:$0xff]
      %v1252 = vld [vmem:[%s1248 + $0x18] sm:$0xff]
      %v1253 = vld [vmem:[%s1248 + $0x20] sm:$0xff]
      %v1254 = vld [vmem:[%s1248 + $0x28] sm:$0xff]
      %v1255 = vld [vmem:[%s1248 + $0x30] sm:$0xff]
      %v1256 = vld [vmem:[%s1248 + $0x38] sm:$0xff]
      %s1257 = scalar_lea.vmem %s9, 1
      %v1258 = vld [vmem:[%s1257] sm:$0x1]
      %v1260 = vperm.slane %v1258, 0
      %1262 = vmatpush.msra.mxu0 0.0
      %1263 = vmatpush.msra.mxu0 0.0
      %1264 = vmatpush.msra.mxu0 0.0
      %1265 = vmatpush.msra.mxu0 0.0
      %1266 = vmatpush.msra.mxu0 0.0
      %1267 = vmatpush.msra.mxu0 0.0
      %1268 = vmatpush.msra.mxu0 0.0
      %1269 = vmatpush.msra.mxu0 0.0
      %1270 = vmatpush.msra.mxu0 %v1256
      %1271 = vmatpush.msra.mxu0 %v1255
      %1272 = vmatpush.msra.mxu0 %v1254
      %1273 = vmatpush.msra.mxu0 %v1253
      %1274 = vmatpush.msra.mxu0 %v1252
      %1275 = vmatpush.msra.mxu0 %v1251
      %1276 = vmatpush.msra.mxu0 %v1250
      %1277 = vmatpush.msra.mxu0 %v1249
      %1278 = vmatmul.f32.gmra.mxu0 %v1019
      %v1279 = vpop.f32.mrf.mxu0
      %v1280 = vadd.f32 %v1260, %v1279
      %1281 = vmatmul.f32.gmra.mxu0 %v1022
      %v1282 = vpop.f32.mrf.mxu0
      %v1283 = vadd.f32 %v1260, %v1282
      %1284 = vdwg.mxu0
      %s1285 = scalar_lea.vmem %s10, 64
      %v1286 = vld [vmem:[%s1285] sm:$0xff]
      %v1287 = vld [vmem:[%s1285 + $0x8] sm:$0xff]
      %v1288 = vld [vmem:[%s1285 + $0x10] sm:$0xff]
      %v1289 = vld [vmem:[%s1285 + $0x18] sm:$0xff]
      %v1290 = vld [vmem:[%s1285 + $0x20] sm:$0xff]
      %v1291 = vld [vmem:[%s1285 + $0x28] sm:$0xff]
      %v1292 = vld [vmem:[%s1285 + $0x30] sm:$0xff]
      %v1293 = vld [vmem:[%s1285 + $0x38] sm:$0xff]
      %s1294 = scalar_lea.vmem %s11, 1
      %v1295 = vld [vmem:[%s1294] sm:$0x1]
      %v1297 = vperm.slane %v1295, 0
      %1299 = vmatpush.msra.mxu0 0.0
      %1300 = vmatpush.msra.mxu0 0.0
      %1301 = vmatpush.msra.mxu0 0.0
      %1302 = vmatpush.msra.mxu0 0.0
      %1303 = vmatpush.msra.mxu0 0.0
      %1304 = vmatpush.msra.mxu0 0.0
      %1305 = vmatpush.msra.mxu0 0.0
      %1306 = vmatpush.msra.mxu0 0.0
      %1307 = vmatpush.msra.mxu0 %v1293
      %1308 = vmatpush.msra.mxu0 %v1292
      %1309 = vmatpush.msra.mxu0 %v1291
      %1310 = vmatpush.msra.mxu0 %v1290
      %1311 = vmatpush.msra.mxu0 %v1289
      %1312 = vmatpush.msra.mxu0 %v1288
      %1313 = vmatpush.msra.mxu0 %v1287
      %1314 = vmatpush.msra.mxu0 %v1286
      %1315 = vmatmul.f32.gmra.mxu0 %v1019
      %v1316 = vpop.f32.mrf.mxu0
      %v1317 = vadd.f32 %v1297, %v1316
      %1318 = vmatmul.f32.gmra.mxu0 %v1022
      %v1319 = vpop.f32.mrf.mxu0
      %v1320 = vadd.f32 %v1297, %v1319
      %1321 = vdwg.mxu0
      %v1323 = vsel %vm1117, %v1243, 0
      %v1326 = vsel %vm1117, %v1246, 0
      %v1329 = vsel %vm1117, %v1280, 0
      %v1332 = vsel %vm1117, %v1283, 0
      %1334 = vmatpush.xpose.msra.mxu0 0.0
      %1335 = vmatpush.xpose.msra.mxu0 0.0
      %1336 = vmatpush.xpose.msra.mxu0 0.0
      %1337 = vmatpush.xpose.msra.mxu0 0.0
      %1338 = vmatpush.xpose.msra.mxu0 0.0
      %1339 = vmatpush.xpose.msra.mxu0 0.0
      %1340 = vmatpush.xpose.msra.mxu0 0.0
      %1341 = vmatpush.xpose.msra.mxu0 0.0
      %1342 = vmatpush.xpose.msra.mxu0 0.0
      %1343 = vmatpush.xpose.msra.mxu0 0.0
      %1344 = vmatpush.xpose.msra.mxu0 0.0
      %1345 = vmatpush.xpose.msra.mxu0 0.0
      %1346 = vmatpush.xpose.msra.mxu0 0.0
      %1347 = vmatpush.xpose.msra.mxu0 0.0
      %1348 = vmatpush.xpose.msra.mxu0 %v1332
      %1349 = vmatpush.xpose.msra.mxu0 %v1329
      %1350 = vmatmul.f32.gmra.mxu0 %v1323
      %v1351 = vpop.f32.mrf.mxu0
      %v1352 = vadd.f32 0.0, %v1351
      %1353 = vmatmul.f32.gmra.mxu0 %v1326
      %v1354 = vpop.f32.mrf.mxu0
      %v1355 = vadd.f32 0.0, %v1354
      %1356 = vdwg.mxu0
      %v1357 = vmul.f32 %v1352, 0.17677669
      %v1358 = vmul.f32 %v1355, 0.17677669
      %v1359 = vsel %vm1155, %v1357, -inf
      %1360 = vmax.xlane.f32.xlu0 %v1359
      %v1361 = vpop.xlane.xlu0 %1360
      %v1362 = vsel %vm1155, %v1358, -inf
      %1363 = vmax.xlane.f32.xlu0 %v1362
      %v1364 = vpop.xlane.xlu0 %1363
      %v1365 = vsub.f32 %v1357, %v1361
      %v1366 = vsub.f32 %v1358, %v1364
      %v1367 = vmul.f32 %v1365, 1.442695
      %v1368 = vpow.pop %v1367
      %v1369 = vmul.f32 %v1366, 1.442695
      %v1370 = vpow.pop %v1369
      %v1371 = vsel %vm1155, %v1368, 0.0
      %1372 = vadd.xlane.f32.xlu0 %v1371
      %v1373 = vpop.xlane.xlu0 %1372
      %v1374 = vsel %vm1155, %v1370, 0.0
      %1375 = vadd.xlane.f32.xlu0 %v1374
      %v1376 = vpop.xlane.xlu0 %1375
      %v1377 = vrcp.pop %v1373
      %v1378 = vrcp.pop %v1376
      %v1379 = vmul.f32 %v1368, %v1377
      %v1380 = vmul.f32 %v1370, %v1378
      %v1382 = vsel %vm1155, %v1379, 0
      %v1385 = vsel %vm1155, %v1380, 0
      %1387 = vmatpush.msra.mxu0 0.0
      %1388 = vmatpush.msra.mxu0 0.0
      %1389 = vmatpush.msra.mxu0 0.0
      %1390 = vmatpush.msra.mxu0 0.0
      %1391 = vmatpush.msra.mxu0 0.0
      %1392 = vmatpush.msra.mxu0 0.0
      %1393 = vmatpush.msra.mxu0 0.0
      %1394 = vmatpush.msra.mxu0 0.0
      %1395 = vmatpush.msra.mxu0 0.0
      %1396 = vmatpush.msra.mxu0 0.0
      %1397 = vmatpush.msra.mxu0 0.0
      %1398 = vmatpush.msra.mxu0 0.0
      %1399 = vmatpush.msra.mxu0 0.0
      %1400 = vmatpush.msra.mxu0 0.0
      %1401 = vmatpush.msra.mxu0 %v1320
      %1402 = vmatpush.msra.mxu0 %v1317
      %1403 = vmatmul.f32.gmra.mxu0 %v1382
      %v1404 = vpop.f32.mrf.mxu0
      %v1405 = vadd.f32 0.0, %v1404
      %1406 = vmatmul.f32.gmra.mxu0 %v1385
      %v1407 = vpop.f32.mrf.mxu0
      %v1408 = vadd.f32 0.0, %v1407
      %1409 = vdwg.mxu0
      %s1410 = scalar_lea.vmem %s12, 32
      %v1411 = vld [vmem:[%s1410] sm:$0xff]
      %v1412 = vld [vmem:[%s1410 + $0x8] sm:$0xff]
      %v1413 = vld [vmem:[%s1410 + $0x10] sm:$0xff]
      %v1414 = vld [vmem:[%s1410 + $0x18] sm:$0xff]
      %v1416 = vsel %vm1117, %v1405, 0
      %v1419 = vsel %vm1117, %v1408, 0
      %1421 = vmatpush.msra.mxu0 0.0
      %1422 = vmatpush.msra.mxu0 0.0
      %1423 = vmatpush.msra.mxu0 0.0
      %1424 = vmatpush.msra.mxu0 0.0
      %1425 = vmatpush.msra.mxu0 0.0
      %1426 = vmatpush.msra.mxu0 0.0
      %1427 = vmatpush.msra.mxu0 0.0
      %1428 = vmatpush.msra.mxu0 0.0
      %1429 = vmatpush.msra.mxu0 0.0
      %1430 = vmatpush.msra.mxu0 0.0
      %1431 = vmatpush.msra.mxu0 0.0
      %1432 = vmatpush.msra.mxu0 0.0
      %1433 = vmatpush.msra.mxu0 %v1414
      %1434 = vmatpush.msra.mxu0 %v1413
      %1435 = vmatpush.msra.mxu0 %v1412
      %1436 = vmatpush.msra.mxu0 %v1411
      %1437 = vmatmul.f32.gmra.mxu0 %v1416
      %v1438 = vpop.f32.mrf.mxu0
      %v1439 = vadd.f32 0.0, %v1438
      %1440 = vmatmul.f32.gmra.mxu0 %v1419
      %v1441 = vpop.f32.mrf.mxu0
      %v1442 = vadd.f32 0.0, %v1441
      %1443 = vdwg.mxu0
      %v1445 = vsel %vm1117, %v1202, 0
      %v1448 = vsel %vm1117, %v1205, 0
      %1450 = vmatpush.msra.mxu0 0.0
      %1451 = vmatpush.msra.mxu0 0.0
      %1452 = vmatpush.msra.mxu0 0.0
      %1453 = vmatpush.msra.mxu0 0.0
      %1454 = vmatpush.msra.mxu0 0.0
      %1455 = vmatpush.msra.mxu0 0.0
      %1456 = vmatpush.msra.mxu0 0.0
      %1457 = vmatpush.msra.mxu0 0.0
      %1458 = vmatpush.msra.mxu0 0.0
      %1459 = vmatpush.msra.mxu0 0.0
      %1460 = vmatpush.msra.mxu0 0.0
      %1461 = vmatpush.msra.mxu0 0.0
      %1462 = vmatpush.msra.mxu0 %v1210
      %1463 = vmatpush.msra.mxu0 %v1209
      %1464 = vmatpush.msra.mxu0 %v1208
      %1465 = vmatpush.msra.mxu0 %v1207
      %1466 = vmatmul.f32.gmra.mxu0 %v1445
      %v1467 = vpop.f32.mrf.mxu0
      %v1468 = vadd.f32 %v1439, %v1467
      %1469 = vmatmul.f32.gmra.mxu0 %v1448
      %v1470 = vpop.f32.mrf.mxu0
      %v1471 = vadd.f32 %v1442, %v1470
      %1472 = vdwg.mxu0
      %v1473 = vadd.f32 %v941, %v1468
      %v1474 = vadd.f32 %v942, %v1471
      %v1475 = vld [vmem:[%s13] sm:$0x1]
      %v1477 = vperm.slane %v1475, 0
      %v1479 = vadd.f32 %v1473, %v1477
      %v1480 = vadd.f32 %v1474, %v1477
      %v1481 = vld [vmem:[%s14] sm:$0x1]
      %v1482 = vld [vmem:[%s15] sm:$0x1]
      %v1483 = vsel %vm886, %v1479, 0.0
      %1484 = vadd.xlane.f32.xlu0 %v1483
      %v1485 = vpop.xlane.xlu0 %1484
      %v1486 = vsel %vm886, %v1480, 0.0
      %1487 = vadd.xlane.f32.xlu0 %v1486
      %v1488 = vpop.xlane.xlu0 %1487
      %v1489 = vmul.f32 %v1485, %v957
      %v1490 = vmul.f32 %v1488, %v957
      %v1491 = vsub.f32 %v1479, %v1489
      %v1492 = vsub.f32 %v1480, %v1490
      %v1493 = vmul.f32 %v1491, %v1491
      %v1494 = vmul.f32 %v1492, %v1492
      %v1495 = vsel %vm886, %v1493, 0.0
      %1496 = vadd.xlane.f32.xlu0 %v1495
      %v1497 = vpop.xlane.xlu0 %1496
      %v1498 = vsel %vm886, %v1494, 0.0
      %1499 = vadd.xlane.f32.xlu0 %v1498
      %v1500 = vpop.xlane.xlu0 %1499
      %v1501 = vmul.f32 %v1497, %v957
      %v1502 = vmul.f32 %v1500, %v957
      %v1503 = vadd.f32 %v1501, 1e-06
      %v1504 = vadd.f32 %v1502, 1e-06
      %v1505 = vrsqrt.pop %v1503
      %v1506 = vmul.f32 %v1505, %v1503
      %v1507 = vmul.f32 %v1506, %v1505
      %v1508 = vmul.f32 0.5, %v1507
      %v1509 = vsub.f32 1.5, %v1508
      %v1510 = vmul.f32 %v1505, %v1509
      %vm1511 = vweird.f32 %v1503
      %vm1512 = vweird.f32 %v1505
      %vm1513 = vmor %vm1511, %vm1512
      %v1514 = vsel %vm1513, %v1505, %v1510
      %v1515 = vrsqrt.pop %v1504
      %v1516 = vmul.f32 %v1515, %v1504
      %v1517 = vmul.f32 %v1516, %v1515
      %v1518 = vmul.f32 0.5, %v1517
      %v1519 = vsub.f32 1.5, %v1518
      %v1520 = vmul.f32 %v1515, %v1519
      %vm1521 = vweird.f32 %v1504
      %vm1522 = vweird.f32 %v1515
      %vm1523 = vmor %vm1521, %vm1522
      %v1524 = vsel %vm1523, %v1515, %v1520
      %v1525 = vmul.f32 %v1491, %v1514
      %v1526 = vmul.f32 %v1492, %v1524
      %v1528 = vperm.slane %v1481, 0
      %v1530 = vmul.f32 %v1525, %v1528
      %v1531 = vmul.f32 %v1526, %v1528
      %v1533 = vperm.slane %v1482, 0
      %v1535 = vadd.f32 %v1530, %v1533
      %v1536 = vadd.f32 %v1531, %v1533
      %v1537 = vld [vmem:[%s16] sm:$0xff]
      %v1538 = vld [vmem:[%s16 + $0x8] sm:$0xff]
      %v1539 = vld [vmem:[%s16 + $0x10] sm:$0xff]
      %v1540 = vld [vmem:[%s16 + $0x18] sm:$0xff]
      %v1541 = vld [vmem:[%s16 + $0x20] sm:$0xff]
      %v1542 = vld [vmem:[%s16 + $0x28] sm:$0xff]
      %v1543 = vld [vmem:[%s16 + $0x30] sm:$0xff]
      %v1544 = vld [vmem:[%s16 + $0x38] sm:$0xff]
      %v1545 = vld [vmem:[%s17] sm:$0x1]
      %v1547 = vperm.slane %v1545, 0
      %v1550 = vsel %vm886, %v1535, 0
      %v1553 = vsel %vm886, %v1536, 0
      %1555 = vmatpush.msra.mxu0 0.0
      %1556 = vmatpush.msra.mxu0 0.0
      %1557 = vmatpush.msra.mxu0 0.0
      %1558 = vmatpush.msra.mxu0 0.0
      %1559 = vmatpush.msra.mxu0 0.0
      %1560 = vmatpush.msra.mxu0 0.0
      %1561 = vmatpush.msra.mxu0 0.0
      %1562 = vmatpush.msra.mxu0 0.0
      %1563 = vmatpush.msra.mxu0 %v1544
      %1564 = vmatpush.msra.mxu0 %v1543
      %1565 = vmatpush.msra.mxu0 %v1542
      %1566 = vmatpush.msra.mxu0 %v1541
      %1567 = vmatpush.msra.mxu0 %v1540
      %1568 = vmatpush.msra.mxu0 %v1539
      %1569 = vmatpush.msra.mxu0 %v1538
      %1570 = vmatpush.msra.mxu0 %v1537
      %1571 = vmatmul.f32.gmra.mxu0 %v1550
      %v1572 = vpop.f32.mrf.mxu0
      %v1573 = vadd.f32 %v1547, %v1572
      %1574 = vmatmul.f32.gmra.mxu0 %v1553
      %v1575 = vpop.f32.mrf.mxu0
      %v1576 = vadd.f32 %v1547, %v1575
      %1577 = vdwg.mxu0
      %v1578 = vmul.f32 %v1573, %v1573
      %v1579 = vmul.f32 %v1576, %v1576
      %v1580 = vmul.f32 %v1573, %v1578
      %v1581 = vmul.f32 %v1576, %v1579
      %v1582 = vmul.f32 %v1580, 0.044715
      %v1583 = vmul.f32 %v1581, 0.044715
      %v1584 = vadd.f32 %v1573, %v1582
      %v1585 = vadd.f32 %v1576, %v1583
      %v1586 = vmul.f32 %v1584, 0.7978846
      %v1587 = vmul.f32 %v1585, 0.7978846
      %v1588 = vtanh.pop %v1586
      %v1589 = vtanh.pop %v1587
      %v1590 = vadd.f32 %v1588, 1.0
      %v1591 = vadd.f32 %v1589, 1.0
      %v1592 = vmul.f32 %v1590, 0.5
      %v1593 = vmul.f32 %v1591, 0.5
      %v1594 = vmul.f32 %v1573, %v1592
      %v1595 = vmul.f32 %v1576, %v1593
      %v1596 = vld [vmem:[%s18] sm:$0xff]
      %v1597 = vld [vmem:[%s18 + $0x8] sm:$0xff]
      %v1598 = vld [vmem:[%s18 + $0x10] sm:$0xff]
      %v1599 = vld [vmem:[%s18 + $0x18] sm:$0xff]
      %v1600 = vld [vmem:[%s18 + $0x20] sm:$0xff]
      %v1601 = vld [vmem:[%s18 + $0x28] sm:$0xff]
      %v1602 = vld [vmem:[%s18 + $0x30] sm:$0xff]
      %v1603 = vld [vmem:[%s18 + $0x38] sm:$0xff]
      %v1604 = vld [vmem:[%s18 + $0x40] sm:$0xff]
      %v1605 = vld [vmem:[%s18 + $0x48] sm:$0xff]
      %v1606 = vld [vmem:[%s18 + $0x50] sm:$0xff]
      %v1607 = vld [vmem:[%s18 + $0x58] sm:$0xff]
      %v1608 = vld [vmem:[%s18 + $0x60] sm:$0xff]
      %v1609 = vld [vmem:[%s18 + $0x68] sm:$0xff]
      %v1610 = vld [vmem:[%s18 + $0x70] sm:$0xff]
      %v1611 = vld [vmem:[%s18 + $0x78] sm:$0xff]
      %1612 = vmatpush.msra.mxu0 %v1611
      %1613 = vmatpush.msra.mxu0 %v1610
      %1614 = vmatpush.msra.mxu0 %v1609
      %1615 = vmatpush.msra.mxu0 %v1608
      %1616 = vmatpush.msra.mxu0 %v1607
      %1617 = vmatpush.msra.mxu0 %v1606
      %1618 = vmatpush.msra.mxu0 %v1605
      %1619 = vmatpush.msra.mxu0 %v1604
      %1620 = vmatpush.msra.mxu0 %v1603
      %1621 = vmatpush.msra.mxu0 %v1602
      %1622 = vmatpush.msra.mxu0 %v1601
      %1623 = vmatpush.msra.mxu0 %v1600
      %1624 = vmatpush.msra.mxu0 %v1599
      %1625 = vmatpush.msra.mxu0 %v1598
      %1626 = vmatpush.msra.mxu0 %v1597
      %1627 = vmatpush.msra.mxu0 %v1596
      %1628 = vmatmul.f32.gmra.mxu0 %v1594
      %v1629 = vpop.f32.mrf.mxu0
      %v1630 = vadd.f32 0.0, %v1629
      %1631 = vmatmul.f32.gmra.mxu0 %v1595
      %v1632 = vpop.f32.mrf.mxu0
      %v1633 = vadd.f32 0.0, %v1632
      %1634 = vdwg.mxu0
      %v1635 = vadd.f32 %v1479, %v1630
      %v1636 = vadd.f32 %v1480, %v1633
      %v1637 = vld [vmem:[%s19] sm:$0x1]
      %v1639 = vperm.slane %v1637, 0
      %v1641 = vadd.f32 %v1635, %v1639
      %v1642 = vadd.f32 %v1636, %v1639
      %v1643 = vld [vmem:[%s20] sm:$0xff]
      %v1644 = vld [vmem:[%s20 + $0x8] sm:$0xff]
      %v1645 = vld [vmem:[%s20 + $0x10] sm:$0xff]
      %v1646 = vld [vmem:[%s20 + $0x18] sm:$0xff]
      %v1647 = vld [vmem:[%s20 + $0x20] sm:$0xff]
      %v1648 = vld [vmem:[%s20 + $0x28] sm:$0xff]
      %v1649 = vld [vmem:[%s20 + $0x30] sm:$0xff]
      %v1650 = vld [vmem:[%s20 + $0x38] sm:$0xff]
      %v1651 = vld [vmem:[%s21] sm:$0x1]
      %v1653 = vperm.slane %v1651, 0
      %v1656 = vsel %vm886, %v1641, 0
      %v1659 = vsel %vm886, %v1642, 0
      %1661 = vmatpush.msra.mxu0 0.0
      %1662 = vmatpush.msra.mxu0 0.0
      %1663 = vmatpush.msra.mxu0 0.0
      %1664 = vmatpush.msra.mxu0 0.0
      %1665 = vmatpush.msra.mxu0 0.0
      %1666 = vmatpush.msra.mxu0 0.0
      %1667 = vmatpush.msra.mxu0 0.0
      %1668 = vmatpush.msra.mxu0 0.0
      %1669 = vmatpush.msra.mxu0 %v1650
      %1670 = vmatpush.msra.mxu0 %v1649
      %1671 = vmatpush.msra.mxu0 %v1648
      %1672 = vmatpush.msra.mxu0 %v1647
      %1673 = vmatpush.msra.mxu0 %v1646
      %1674 = vmatpush.msra.mxu0 %v1645
      %1675 = vmatpush.msra.mxu0 %v1644
      %1676 = vmatpush.msra.mxu0 %v1643
      %1677 = vmatmul.f32.gmra.mxu0 %v1656
      %v1678 = vpop.f32.mrf.mxu0
      %v1679 = vadd.f32 %v1653, %v1678
      %1680 = vmatmul.f32.gmra.mxu0 %v1659
      %v1681 = vpop.f32.mrf.mxu0
      %v1682 = vadd.f32 %v1653, %v1681
      %1683 = vdwg.mxu0
      %v1684 = vld [vmem:[%s22] sm:$0x1]
      %v1685 = vld [vmem:[%s23] sm:$0x1]
      %v1686 = vsel %vm1117, %v1679, 0.0
      %1687 = vadd.xlane.f32.xlu0 %v1686
      %v1688 = vpop.xlane.xlu0 %1687
      %v1689 = vsel %vm1117, %v1682, 0.0
      %1690 = vadd.xlane.f32.xlu0 %v1689
      %v1691 = vpop.xlane.xlu0 %1690
      %v1692 = vrcp.pop 32.0
      %v1693 = vmul.f32 32.0, %v1692
      %v1694 = vsub.f32 1.0, %v1693
      %v1695 = vmul.f32 %v1692, %v1694
      %v1696 = vadd.f32 %v1692, %v1695
      %vm1697 = vweird.f32 %v1692
      %v1698 = vsel %vm1697, %v1692, %v1696
      %v1699 = vmul.f32 %v1688, %v1698
      %v1700 = vmul.f32 %v1691, %v1698
      %v1701 = vsub.f32 %v1679, %v1699
      %v1702 = vsub.f32 %v1682, %v1700
      %v1703 = vmul.f32 %v1701, %v1701
      %v1704 = vmul.f32 %v1702, %v1702
      %v1705 = vsel %vm1117, %v1703, 0.0
      %1706 = vadd.xlane.f32.xlu0 %v1705
      %v1707 = vpop.xlane.xlu0 %1706
      %v1708 = vsel %vm1117, %v1704, 0.0
      %1709 = vadd.xlane.f32.xlu0 %v1708
      %v1710 = vpop.xlane.xlu0 %1709
      %v1711 = vmul.f32 %v1707, %v1698
      %v1712 = vmul.f32 %v1710, %v1698
      %v1713 = vadd.f32 %v1711, 1e-06
      %v1714 = vadd.f32 %v1712, 1e-06
      %v1715 = vrsqrt.pop %v1713
      %v1716 = vmul.f32 %v1715, %v1713
      %v1717 = vmul.f32 %v1716, %v1715
      %v1718 = vmul.f32 0.5, %v1717
      %v1719 = vsub.f32 1.5, %v1718
      %v1720 = vmul.f32 %v1715, %v1719
      %vm1721 = vweird.f32 %v1713
      %vm1722 = vweird.f32 %v1715
      %vm1723 = vmor %vm1721, %vm1722
      %v1724 = vsel %vm1723, %v1715, %v1720
      %v1725 = vrsqrt.pop %v1714
      %v1726 = vmul.f32 %v1725, %v1714
      %v1727 = vmul.f32 %v1726, %v1725
      %v1728 = vmul.f32 0.5, %v1727
      %v1729 = vsub.f32 1.5, %v1728
      %v1730 = vmul.f32 %v1725, %v1729
      %vm1731 = vweird.f32 %v1714
      %vm1732 = vweird.f32 %v1725
      %vm1733 = vmor %vm1731, %vm1732
      %v1734 = vsel %vm1733, %v1725, %v1730
      %v1735 = vmul.f32 %v1701, %v1724
      %v1736 = vmul.f32 %v1702, %v1734
      %v1738 = vperm.slane %v1684, 0
      %v1740 = vmul.f32 %v1735, %v1738
      %v1741 = vmul.f32 %v1736, %v1738
      %v1743 = vperm.slane %v1685, 0
      %v1745 = vadd.f32 %v1740, %v1743
      %v1746 = vadd.f32 %v1741, %v1743
      %v1747 = vld [vmem:[%s24] sm:$0xff]
      %v1748 = vld [vmem:[%s24 + $0x8] sm:$0xff]
      %v1749 = vld [vmem:[%s24 + $0x10] sm:$0xff]
      %v1750 = vld [vmem:[%s24 + $0x18] sm:$0xff]
      %v1751 = vld [vmem:[%s25] sm:$0x1]
      %v1753 = vperm.slane %v1751, 0
      %v1756 = vsel %vm1117, %v1745, 0
      %v1759 = vsel %vm1117, %v1746, 0
      %1761 = vmatpush.msra.mxu0 0.0
      %1762 = vmatpush.msra.mxu0 0.0
      %1763 = vmatpush.msra.mxu0 0.0
      %1764 = vmatpush.msra.mxu0 0.0
      %1765 = vmatpush.msra.mxu0 0.0
      %1766 = vmatpush.msra.mxu0 0.0
      %1767 = vmatpush.msra.mxu0 0.0
      %1768 = vmatpush.msra.mxu0 0.0
      %1769 = vmatpush.msra.mxu0 0.0
      %1770 = vmatpush.msra.mxu0 0.0
      %1771 = vmatpush.msra.mxu0 0.0
      %1772 = vmatpush.msra.mxu0 0.0
      %1773 = vmatpush.msra.mxu0 %v1750
      %1774 = vmatpush.msra.mxu0 %v1749
      %1775 = vmatpush.msra.mxu0 %v1748
      %1776 = vmatpush.msra.mxu0 %v1747
      %1777 = vmatmul.f32.gmra.mxu0 %v1756
      %v1778 = vpop.f32.mrf.mxu0
      %v1779 = vadd.f32 %v1753, %v1778
      %1780 = vmatmul.f32.gmra.mxu0 %v1759
      %v1781 = vpop.f32.mrf.mxu0
      %v1782 = vadd.f32 %v1753, %v1781
      %1783 = vdwg.mxu0
      %v1784 = vmul.f32 %v1779, %v1779
      %v1785 = vmul.f32 %v1782, %v1782
      %v1786 = vmul.f32 %v1779, %v1784
      %v1787 = vmul.f32 %v1782, %v1785
      %v1788 = vmul.f32 %v1786, 0.044715
      %v1789 = vmul.f32 %v1787, 0.044715
      %v1790 = vadd.f32 %v1779, %v1788
      %v1791 = vadd.f32 %v1782, %v1789
      %v1792 = vmul.f32 %v1790, 0.7978846
      %v1793 = vmul.f32 %v1791, 0.7978846
      %v1794 = vtanh.pop %v1792
      %v1795 = vtanh.pop %v1793
      %v1796 = vadd.f32 %v1794, 1.0
      %v1797 = vadd.f32 %v1795, 1.0
      %v1798 = vmul.f32 %v1796, 0.5
      %v1799 = vmul.f32 %v1797, 0.5
      %v1800 = vmul.f32 %v1779, %v1798
      %v1801 = vmul.f32 %v1782, %v1799
      %v1802 = vld [vmem:[%s26] sm:$0xff]
      %v1803 = vld [vmem:[%s26 + $0x8] sm:$0xff]
      %v1804 = vld [vmem:[%s27] sm:$0x1]
      %v1806 = vperm.slane %v1804, 0
      %v1809 = vsel %vm1155, %v1800, 0
      %v1812 = vsel %vm1155, %v1801, 0
      %1814 = vmatpush.msra.mxu0 0.0
      %1815 = vmatpush.msra.mxu0 0.0
      %1816 = vmatpush.msra.mxu0 0.0
      %1817 = vmatpush.msra.mxu0 0.0
      %1818 = vmatpush.msra.mxu0 0.0
      %1819 = vmatpush.msra.mxu0 0.0
      %1820 = vmatpush.msra.mxu0 0.0
      %1821 = vmatpush.msra.mxu0 0.0
      %1822 = vmatpush.msra.mxu0 0.0
      %1823 = vmatpush.msra.mxu0 0.0
      %1824 = vmatpush.msra.mxu0 0.0
      %1825 = vmatpush.msra.mxu0 0.0
      %1826 = vmatpush.msra.mxu0 0.0
      %1827 = vmatpush.msra.mxu0 0.0
      %1828 = vmatpush.msra.mxu0 %v1803
      %1829 = vmatpush.msra.mxu0 %v1802
      %1830 = vmatmul.f32.gmra.mxu0 %v1809
      %v1831 = vpop.f32.mrf.mxu0
      %v1832 = vadd.f32 %v1806, %v1831
      %1833 = vmatmul.f32.gmra.mxu0 %v1812
      %v1834 = vpop.f32.mrf.mxu0
      %v1835 = vadd.f32 %v1806, %v1834
      %1836 = vdwg.mxu0
      %1837 = vst [vmem:[%s852] sm:$0xff] %v1832
      %1838 = vst [vmem:[%s852 + $0x20] sm:$0xff] %v1835
      %s1839 = scalar_lea.vmem %s24, 32
      %v1840 = vld [vmem:[%s1839] sm:$0xff]
      %v1841 = vld [vmem:[%s1839 + $0x8] sm:$0xff]
      %v1842 = vld [vmem:[%s1839 + $0x10] sm:$0xff]
      %v1843 = vld [vmem:[%s1839 + $0x18] sm:$0xff]
      %v1844 = vld [vmem:[%s25] sm:$0x1]
      %v1846 = vperm.slane %v1844, 0
      %1848 = vmatpush.msra.mxu0 0.0
      %1849 = vmatpush.msra.mxu0 0.0
      %1850 = vmatpush.msra.mxu0 0.0
      %1851 = vmatpush.msra.mxu0 0.0
      %1852 = vmatpush.msra.mxu0 0.0
      %1853 = vmatpush.msra.mxu0 0.0
      %1854 = vmatpush.msra.mxu0 0.0
      %1855 = vmatpush.msra.mxu0 0.0
      %1856 = vmatpush.msra.mxu0 0.0
      %1857 = vmatpush.msra.mxu0 0.0
      %1858 = vmatpush.msra.mxu0 0.0
      %1859 = vmatpush.msra.mxu0 0.0
      %1860 = vmatpush.msra.mxu0 %v1843
      %1861 = vmatpush.msra.mxu0 %v1842
      %1862 = vmatpush.msra.mxu0 %v1841
      %1863 = vmatpush.msra.mxu0 %v1840
      %1864 = vmatmul.f32.gmra.mxu0 %v1756
      %v1865 = vpop.f32.mrf.mxu0
      %v1866 = vadd.f32 %v1846, %v1865
      %1867 = vmatmul.f32.gmra.mxu0 %v1759
      %v1868 = vpop.f32.mrf.mxu0
      %v1869 = vadd.f32 %v1846, %v1868
      %1870 = vdwg.mxu0
      %v1871 = vmul.f32 %v1866, %v1866
      %v1872 = vmul.f32 %v1869, %v1869
      %v1873 = vmul.f32 %v1866, %v1871
      %v1874 = vmul.f32 %v1869, %v1872
      %v1875 = vmul.f32 %v1873, 0.044715
      %v1876 = vmul.f32 %v1874, 0.044715
      %v1877 = vadd.f32 %v1866, %v1875
      %v1878 = vadd.f32 %v1869, %v1876
      %v1879 = vmul.f32 %v1877, 0.7978846
      %v1880 = vmul.f32 %v1878, 0.7978846
      %v1881 = vtanh.pop %v1879
      %v1882 = vtanh.pop %v1880
      %v1883 = vadd.f32 %v1881, 1.0
      %v1884 = vadd.f32 %v1882, 1.0
      %v1885 = vmul.f32 %v1883, 0.5
      %v1886 = vmul.f32 %v1884, 0.5
      %v1887 = vmul.f32 %v1866, %v1885
      %v1888 = vmul.f32 %v1869, %v1886
      %v1889 = vld [vmem:[%s26] sm:$0xff]
      %v1890 = vld [vmem:[%s26 + $0x8] sm:$0xff]
      %v1891 = vld [vmem:[%s27] sm:$0x1]
      %v1893 = vperm.slane %v1891, 0
      %v1896 = vsel %vm1155, %v1887, 0
      %v1899 = vsel %vm1155, %v1888, 0
      %1901 = vmatpush.msra.mxu0 0.0
      %1902 = vmatpush.msra.mxu0 0.0
      %1903 = vmatpush.msra.mxu0 0.0
      %1904 = vmatpush.msra.mxu0 0.0
      %1905 = vmatpush.msra.mxu0 0.0
      %1906 = vmatpush.msra.mxu0 0.0
      %1907 = vmatpush.msra.mxu0 0.0
      %1908 = vmatpush.msra.mxu0 0.0
      %1909 = vmatpush.msra.mxu0 0.0
      %1910 = vmatpush.msra.mxu0 0.0
      %1911 = vmatpush.msra.mxu0 0.0
      %1912 = vmatpush.msra.mxu0 0.0
      %1913 = vmatpush.msra.mxu0 0.0
      %1914 = vmatpush.msra.mxu0 0.0
      %1915 = vmatpush.msra.mxu0 %v1890
      %1916 = vmatpush.msra.mxu0 %v1889
      %1917 = vmatmul.f32.gmra.mxu0 %v1896
      %v1918 = vpop.f32.mrf.mxu0
      %v1919 = vadd.f32 %v1893, %v1918
      %1920 = vmatmul.f32.gmra.mxu0 %v1899
      %v1921 = vpop.f32.mrf.mxu0
      %v1922 = vadd.f32 %v1893, %v1921
      %1923 = vdwg.mxu0
      %1924 = vst [vmem:[%s852 + $0x8] sm:$0xff] %v1919
      %1925 = vst [vmem:[%s852 + $0x28] sm:$0xff] %v1922
      %s1926 = scalar_lea.vmem %s24, 64
      %v1927 = vld [vmem:[%s1926] sm:$0xff]
      %v1928 = vld [vmem:[%s1926 + $0x8] sm:$0xff]
      %v1929 = vld [vmem:[%s1926 + $0x10] sm:$0xff]
      %v1930 = vld [vmem:[%s1926 + $0x18] sm:$0xff]
      %v1931 = vld [vmem:[%s25] sm:$0x1]
      %v1933 = vperm.slane %v1931, 0
      %1935 = vmatpush.msra.mxu0 0.0
      %1936 = vmatpush.msra.mxu0 0.0
      %1937 = vmatpush.msra.mxu0 0.0
      %1938 = vmatpush.msra.mxu0 0.0
      %1939 = vmatpush.msra.mxu0 0.0
      %1940 = vmatpush.msra.mxu0 0.0
      %1941 = vmatpush.msra.mxu0 0.0
      %1942 = vmatpush.msra.mxu0 0.0
      %1943 = vmatpush.msra.mxu0 0.0
      %1944 = vmatpush.msra.mxu0 0.0
      %1945 = vmatpush.msra.mxu0 0.0
      %1946 = vmatpush.msra.mxu0 0.0
      %1947 = vmatpush.msra.mxu0 %v1930
      %1948 = vmatpush.msra.mxu0 %v1929
      %1949 = vmatpush.msra.mxu0 %v1928
      %1950 = vmatpush.msra.mxu0 %v1927
      %1951 = vmatmul.f32.gmra.mxu0 %v1756
      %v1952 = vpop.f32.mrf.mxu0
      %v1953 = vadd.f32 %v1933, %v1952
      %1954 = vmatmul.f32.gmra.mxu0 %v1759
      %v1955 = vpop.f32.mrf.mxu0
      %v1956 = vadd.f32 %v1933, %v1955
      %1957 = vdwg.mxu0
      %v1958 = vmul.f32 %v1953, %v1953
      %v1959 = vmul.f32 %v1956, %v1956
      %v1960 = vmul.f32 %v1953, %v1958
      %v1961 = vmul.f32 %v1956, %v1959
      %v1962 = vmul.f32 %v1960, 0.044715
      %v1963 = vmul.f32 %v1961, 0.044715
      %v1964 = vadd.f32 %v1953, %v1962
      %v1965 = vadd.f32 %v1956, %v1963
      %v1966 = vmul.f32 %v1964, 0.7978846
      %v1967 = vmul.f32 %v1965, 0.7978846
      %v1968 = vtanh.pop %v1966
      %v1969 = vtanh.pop %v1967
      %v1970 = vadd.f32 %v1968, 1.0
      %v1971 = vadd.f32 %v1969, 1.0
      %v1972 = vmul.f32 %v1970, 0.5
      %v1973 = vmul.f32 %v1971, 0.5
      %v1974 = vmul.f32 %v1953, %v1972
      %v1975 = vmul.f32 %v1956, %v1973
      %v1976 = vld [vmem:[%s26] sm:$0xff]
      %v1977 = vld [vmem:[%s26 + $0x8] sm:$0xff]
      %v1978 = vld [vmem:[%s27] sm:$0x1]
      %v1980 = vperm.slane %v1978, 0
      %v1983 = vsel %vm1155, %v1974, 0
      %v1986 = vsel %vm1155, %v1975, 0
      %1988 = vmatpush.msra.mxu0 0.0
      %1989 = vmatpush.msra.mxu0 0.0
      %1990 = vmatpush.msra.mxu0 0.0
      %1991 = vmatpush.msra.mxu0 0.0
      %1992 = vmatpush.msra.mxu0 0.0
      %1993 = vmatpush.msra.mxu0 0.0
      %1994 = vmatpush.msra.mxu0 0.0
      %1995 = vmatpush.msra.mxu0 0.0
      %1996 = vmatpush.msra.mxu0 0.0
      %1997 = vmatpush.msra.mxu0 0.0
      %1998 = vmatpush.msra.mxu0 0.0
      %1999 = vmatpush.msra.mxu0 0.0
      %2000 = vmatpush.msra.mxu0 0.0
      %2001 = vmatpush.msra.mxu0 0.0
      %2002 = vmatpush.msra.mxu0 %v1977
      %2003 = vmatpush.msra.mxu0 %v1976
      %2004 = vmatmul.f32.gmra.mxu0 %v1983
      %v2005 = vpop.f32.mrf.mxu0
      %v2006 = vadd.f32 %v1980, %v2005
      %2007 = vmatmul.f32.gmra.mxu0 %v1986
      %v2008 = vpop.f32.mrf.mxu0
      %v2009 = vadd.f32 %v1980, %v2008
      %2010 = vdwg.mxu0
      %2011 = vst [vmem:[%s852 + $0x10] sm:$0xff] %v2006
      %2012 = vst [vmem:[%s852 + $0x30] sm:$0xff] %v2009
      %s2013 = scalar_lea.vmem %s24, 96
      %v2014 = vld [vmem:[%s2013] sm:$0xff]
      %v2015 = vld [vmem:[%s2013 + $0x8] sm:$0xff]
      %v2016 = vld [vmem:[%s2013 + $0x10] sm:$0xff]
      %v2017 = vld [vmem:[%s2013 + $0x18] sm:$0xff]
      %v2018 = vld [vmem:[%s25] sm:$0x1]
      %v2020 = vperm.slane %v2018, 0
      %2022 = vmatpush.msra.mxu0 0.0
      %2023 = vmatpush.msra.mxu0 0.0
      %2024 = vmatpush.msra.mxu0 0.0
      %2025 = vmatpush.msra.mxu0 0.0
      %2026 = vmatpush.msra.mxu0 0.0
      %2027 = vmatpush.msra.mxu0 0.0
      %2028 = vmatpush.msra.mxu0 0.0
      %2029 = vmatpush.msra.mxu0 0.0
      %2030 = vmatpush.msra.mxu0 0.0
      %2031 = vmatpush.msra.mxu0 0.0
      %2032 = vmatpush.msra.mxu0 0.0
      %2033 = vmatpush.msra.mxu0 0.0
      %2034 = vmatpush.msra.mxu0 %v2017
      %2035 = vmatpush.msra.mxu0 %v2016
      %2036 = vmatpush.msra.mxu0 %v2015
      %2037 = vmatpush.msra.mxu0 %v2014
      %2038 = vmatmul.f32.gmra.mxu0 %v1756
      %v2039 = vpop.f32.mrf.mxu0
      %v2040 = vadd.f32 %v2020, %v2039
      %2041 = vmatmul.f32.gmra.mxu0 %v1759
      %v2042 = vpop.f32.mrf.mxu0
      %v2043 = vadd.f32 %v2020, %v2042
      %2044 = vdwg.mxu0
      %v2045 = vmul.f32 %v2040, %v2040
      %v2046 = vmul.f32 %v2043, %v2043
      %v2047 = vmul.f32 %v2040, %v2045
      %v2048 = vmul.f32 %v2043, %v2046
      %v2049 = vmul.f32 %v2047, 0.044715
      %v2050 = vmul.f32 %v2048, 0.044715
      %v2051 = vadd.f32 %v2040, %v2049
      %v2052 = vadd.f32 %v2043, %v2050
      %v2053 = vmul.f32 %v2051, 0.7978846
      %v2054 = vmul.f32 %v2052, 0.7978846
      %v2055 = vtanh.pop %v2053
      %v2056 = vtanh.pop %v2054
      %v2057 = vadd.f32 %v2055, 1.0
      %v2058 = vadd.f32 %v2056, 1.0
      %v2059 = vmul.f32 %v2057, 0.5
      %v2060 = vmul.f32 %v2058, 0.5
      %v2061 = vmul.f32 %v2040, %v2059
      %v2062 = vmul.f32 %v2043, %v2060
      %v2063 = vld [vmem:[%s26] sm:$0xff]
      %v2064 = vld [vmem:[%s26 + $0x8] sm:$0xff]
      %v2065 = vld [vmem:[%s27] sm:$0x1]
      %v2067 = vperm.slane %v2065, 0
      %v2070 = vsel %vm1155, %v2061, 0
      %v2073 = vsel %vm1155, %v2062, 0
      %2075 = vmatpush.msra.mxu0 0.0
      %2076 = vmatpush.msra.mxu0 0.0
      %2077 = vmatpush.msra.mxu0 0.0
      %2078 = vmatpush.msra.mxu0 0.0
      %2079 = vmatpush.msra.mxu0 0.0
      %2080 = vmatpush.msra.mxu0 0.0
      %2081 = vmatpush.msra.mxu0 0.0
      %2082 = vmatpush.msra.mxu0 0.0
      %2083 = vmatpush.msra.mxu0 0.0
      %2084 = vmatpush.msra.mxu0 0.0
      %2085 = vmatpush.msra.mxu0 0.0
      %2086 = vmatpush.msra.mxu0 0.0
      %2087 = vmatpush.msra.mxu0 0.0
      %2088 = vmatpush.msra.mxu0 0.0
      %2089 = vmatpush.msra.mxu0 %v2064
      %2090 = vmatpush.msra.mxu0 %v2063
      %2091 = vmatmul.f32.gmra.mxu0 %v2070
      %v2092 = vpop.f32.mrf.mxu0
      %v2093 = vadd.f32 %v2067, %v2092
      %2094 = vmatmul.f32.gmra.mxu0 %v2073
      %v2095 = vpop.f32.mrf.mxu0
      %v2096 = vadd.f32 %v2067, %v2095
      %2097 = vdwg.mxu0
      %2098 = vst [vmem:[%s852 + $0x18] sm:$0xff] %v2093
      %2099 = vst [vmem:[%s852 + $0x38] sm:$0xff] %v2096
      %s2100 = smul.u32 2, %s39
      %p2101 = scmp.lt.s32.totalorder %s2100, 3
      %s2102 = scalar_select %p2101, %s2100, 3
      %s2103 = smul.addr %s2102, 4
      %s2104 = smul.addr %s2103, 8
      %s2105 = scalar_lea.vmem %s28, %s2104
      // Predicated region
      $region133: #{sam_vit_forward.1} parent=131 // pred_check
        %p2106 = pneg %p650
      $region134: #{sam_vit_forward.1} parent=131 // pred_check_branch
        %2108 = sbr.rel (%p2106) target = $region136
      $region135: #{sam_vit_forward.1} parent=131 // pred_region
        %s2109 = smul.u32 2, %s39
      $region136: #{sam_vit_forward.1} parent=131 // pred_fallthru
        _
    $region132: #{sam_vit_forward.1} parent=5 // pred_fallthru
      _
    %p2110 = scmp.le.s32.totalorder 2, %s34
    // Predicated region
    $region137: #{sam_vit_forward.1} parent=5 // pred_check
      %p2111 = pneg %p2110
    $region138: #{sam_vit_forward.1} parent=5 // pred_check_branch
      %2113 = sbr.rel (%p2111) target = $region140
    $region139: #{sam_vit_forward.1} parent=5 // pred_region
      %s2114 = ssub.s32 %s34, 2
      // Predicated region
      $region141: #{sam_vit_forward.1} parent=139 // pred_check
        %p2115 = pneg %p656
      $region142: #{sam_vit_forward.1} parent=139 // pred_check_branch
        %2117 = sbr.rel (%p2115) target = $region144
      $region143: #{sam_vit_forward.1} parent=139 // pred_region
        %s2118 = smul.u32 2, %s40
        %p2119 = scmp.lt.s32.totalorder %s2118, 3
        %s2120 = scalar_select %p2119, %s2118, 3
        %s2121 = smul.addr %s2120, 4
        %s2122 = smul.addr %s2121, 8
        %s2123 = scalar_lea.vmem %s28, %s2122
      $region144: #{sam_vit_forward.1} parent=139 // pred_fallthru
        _
    $region140: #{sam_vit_forward.1} parent=5 // pred_fallthru
      _
  $region6: #{sam_vit_forward.1} parent=0 // loop_footer
    %s38 = sadd.s32 1, %s34
  $region7: #{sam_vit_forward.1} parent=0 // loop_footer_branch
    %33 = sbr.rel target = $region3
  $region8: #{sam_vit_forward.1} parent=0 // loop_exit
    _

</llo_original>
